<compile_context>
chip_gen: v5e
topology: v5e:2x2
jax: 0.10.0
libtpu: 0.0.40
codegen_flags: <defaults>
</compile_context>

<pallas_src>
import functools

import jax
import jax.numpy as jnp
from jax.experimental import pallas as pl
from jax.experimental.pallas import tpu as pltpu


_SQRT_HALF = 0.7071067811865476


def _erf_approx(x):
    # Abramowitz & Stegun 7.1.26 rational approximation, |error| <= 1.5e-7.
    # Uses only exp / mul / add / div / select (all have Mosaic lowerings),
    # matching PyTorch's exact erf-based nn.GELU to ~1e-7.
    a1, a2, a3 = 0.254829592, -0.284496736, 1.421413741
    a4, a5, p = -1.453152027, 1.061405429, 0.3275911
    sign = jnp.where(x < 0.0, -1.0, 1.0)
    ax = jnp.abs(x)
    t = 1.0 / (1.0 + p * ax)
    poly = ((((a5 * t + a4) * t + a3) * t + a2) * t + a1) * t
    return sign * (1.0 - poly * jnp.exp(-ax * ax))


def _gelu(x):
    return 0.5 * x * (1.0 + _erf_approx(x * _SQRT_HALF))


def _block_kernel(x_ref, dww_ref, dwb_ref, nsc_ref, nsh_ref,
                  w1_ref, b1_ref, w2_ref, b2_ref, o_ref,
                  *, kernel_size: int, seq_len: int):
    """One (batch, variable) tile of the ModernTCN Block forward.

    x_ref : (D, N)   input tile (also the residual)
    dww   : (D, K)   reparam-merged depthwise kernel (large + small, BN fused)
    dwb   : (D, 1)   merged depthwise bias
    nsc/nsh: (D, 1)  fused BatchNorm1d(dmodel) scale / shift (eval mode)
    w1/b1 : (F, D) / (F, 1)   grouped 1x1 conv #1 for this variable
    w2/b2 : (D, F) / (D, 1)   grouped 1x1 conv #2 for this variable
    o_ref : (D, N)   output tile
    """
    x = x_ref[...].astype(jnp.float32)          # single aligned load of the tile
    d = x.shape[0]
    pad = kernel_size // 2

    # Zero padding for the "same" conv built in registers/VMEM from the
    # already-resident tile -- no padded copy ever touches HBM.
    if pad > 0:
        zeros = jnp.zeros((d, pad), jnp.float32)
        xp = jnp.concatenate([zeros, x, zeros], axis=1)   # (D, N + 2*pad)
    else:
        xp = x

    # Depthwise "same" conv along time: K shifted views of the resident tile.
    w = dww_ref[...].astype(jnp.float32)        # (D, K), loaded once
    acc = jnp.zeros_like(x)
    for k in range(kernel_size):                # small static unroll
        acc = acc + w[:, k:k + 1] * xp[:, k:k + seq_len]
    h = acc + dwb_ref[...]

    # BatchNorm1d(dmodel), eval mode, folded into one multiply-add.
    h = h * nsc_ref[...] + nsh_ref[...]

    # Grouped pointwise FFN (per-variable matmuls -> MXU) + exact GELU.
    z = jnp.dot(w1_ref[...], h, preferred_element_type=jnp.float32) + b1_ref[...]
    z = _gelu(z)
    y = jnp.dot(w2_ref[...], z, preferred_element_type=jnp.float32) + b2_ref[...]

    # Residual, single lane-dense store.
    o_ref[...] = (x + y).astype(o_ref.dtype)


def modern_tcn_block(x, params, *, large_size, small_size, eps=1e-5):
    """Forward pass of ModernTCN `Block` (inference mode) via Pallas on TPU."""
    assert large_size % 2 == 1 and small_size % 2 == 1, "odd kernel sizes expected"
    b, m, d, n = x.shape
    f = params["w1"].shape[1]

    # ---- Host-side parameter folding (tiny, done once) ----------------------
    def fuse_conv_bn(w, gamma, beta, mean, var):
        t = gamma / jnp.sqrt(var + eps)
        return w[:, 0, :] * t[:, None], beta - mean * t

    w_l, b_l = fuse_conv_bn(params["w_large"], params["bn_l_gamma"],
                            params["bn_l_beta"], params["bn_l_mean"],
                            params["bn_l_var"])
    w_s, b_s = fuse_conv_bn(params["w_small"], params["bn_s_gamma"],
                            params["bn_s_beta"], params["bn_s_mean"],
                            params["bn_s_var"])
    pd = (large_size - small_size) // 2
    dw_w = (w_l + jnp.pad(w_s, ((0, 0), (pd, pd)))).reshape(m, d, large_size)
    dw_w = dw_w.astype(jnp.float32)
    dw_b = (b_l + b_s).reshape(m, d, 1).astype(jnp.float32)

    n_t = params["n_gamma"] / jnp.sqrt(params["n_var"] + eps)
    n_scale = n_t.reshape(d, 1).astype(jnp.float32)
    n_shift = (params["n_beta"] - params["n_mean"] * n_t).reshape(d, 1)
    n_shift = n_shift.astype(jnp.float32)

    w1 = params["w1"].astype(jnp.float32)                    # (M, F, D)
    b1 = params["b1"].reshape(m, f, 1).astype(jnp.float32)   # (M, F, 1)
    w2 = params["w2"].astype(jnp.float32)                    # (M, D, F)
    b2 = params["b2"].reshape(m, d, 1).astype(jnp.float32)   # (M, D, 1)

    kernel = functools.partial(_block_kernel, kernel_size=large_size, seq_len=n)

    # TODO(synk): for long sequences / large dmodel add a time-axis grid dim
    # with a (K-1)-halo'd input block so per-step VMEM fits v7x's 64 MiB.
    return pl.pallas_call(
        kernel,
        out_shape=jax.ShapeDtypeStruct((b, m, d, n), x.dtype),
        grid_spec=pltpu.PrefetchScalarGridSpec(
            num_scalar_prefetch=0,
            grid=(b, m),
            in_specs=[
                pl.BlockSpec((None, None, d, n), lambda i, j: (i, j, 0, 0)),
                pl.BlockSpec((None, d, large_size), lambda i, j: (j, 0, 0)),
                pl.BlockSpec((None, d, 1), lambda i, j: (j, 0, 0)),
                pl.BlockSpec((d, 1), lambda i, j: (0, 0)),
                pl.BlockSpec((d, 1), lambda i, j: (0, 0)),
                pl.BlockSpec((None, f, d), lambda i, j: (j, 0, 0)),
                pl.BlockSpec((None, f, 1), lambda i, j: (j, 0, 0)),
                pl.BlockSpec((None, d, f), lambda i, j: (j, 0, 0)),
                pl.BlockSpec((None, d, 1), lambda i, j: (j, 0, 0)),
            ],
            out_specs=pl.BlockSpec((None, None, d, n), lambda i, j: (i, j, 0, 0)),
        ),
        compiler_params=pltpu.CompilerParams(
            dimension_semantics=("parallel", "parallel"),
            vmem_limit_bytes=32 * 1024 * 1024,
        ),
    )(x, dw_w, dw_b, n_scale, n_shift, w1, b1, w2, b2)


def block_ref(x, params, *, large_size, small_size, eps=1e-5):
    """Pure-JAX reference mirroring PyTorch Block.forward (eval mode)."""
    B, M, D, N = x.shape
    C = M * D
    xf = x.reshape(B, C, N)

    def dw_conv(inp, w, k):
        return jax.lax.conv_general_dilated(
            inp, w, window_strides=(1,), padding=[(k // 2, k // 2)],
            dimension_numbers=("NCH", "OIH", "NCH"), feature_group_count=C)

    def bn(hc, gamma, beta, mean, var):
        inv = gamma / jnp.sqrt(var + eps)
        return hc * inv[None, :, None] + (beta - mean * inv)[None, :, None]

    # dw = ReparamLargeKernelConv (unmerged path): conv_bn(large) + conv_bn(small)
    h = bn(dw_conv(xf, params["w_large"], large_size),
           params["bn_l_gamma"], params["bn_l_beta"],
           params["bn_l_mean"], params["bn_l_var"])
    h = h + bn(dw_conv(xf, params["w_small"], small_size),
               params["bn_s_gamma"], params["bn_s_beta"],
               params["bn_s_mean"], params["bn_s_var"])

    # self.norm = BatchNorm1d(dmodel) on the (B*M, D, N) view, eval mode.
    hn = h.reshape(B * M, D, N)
    hn = bn(hn, params["n_gamma"], params["n_beta"],
            params["n_mean"], params["n_var"])
    hg = hn.reshape(B, M, D, N)

    # ffn1pw1 (groups=nvars) -> GELU (exact) -> ffn1pw2 (groups=nvars); dropout=id.
    z = jnp.einsum("bmdn,mfd->bmfn", hg, params["w1"]) \
        + params["b1"][None, :, :, None]
    z = 0.5 * z * (1.0 + jax.lax.erf(z * _SQRT_HALF))
    y = jnp.einsum("bmfn,mdf->bmdn", z, params["w2"]) \
        + params["b2"][None, :, :, None]
    return x + y


if __name__ == "__main__":
    key = jax.random.PRNGKey(0)
    B, M, D, N = 2, 3, 32, 128          # batch, nvars, dmodel, seq length
    F = 64                              # dff
    K_L, K_S = 13, 5                    # large_size, small_size

    keys = jax.random.split(key, 19)
    C = M * D
    params = dict(
        w_large=jax.random.normal(keys[0], (C, 1, K_L), jnp.float32) / jnp.sqrt(K_L),
        w_small=jax.random.normal(keys[1], (C, 1, K_S), jnp.float32) / jnp.sqrt(K_S),
        bn_l_gamma=jax.random.uniform(keys[2], (C,), jnp.float32, 0.5, 1.5),
        bn_l_beta=0.1 * jax.random.normal(keys[3], (C,), jnp.float32),
        bn_l_mean=0.1 * jax.random.normal(keys[4], (C,), jnp.float32),
        bn_l_var=jax.random.uniform(keys[5], (C,), jnp.float32, 0.5, 1.5),
        bn_s_gamma=jax.random.uniform(keys[6], (C,), jnp.float32, 0.5, 1.5),
        bn_s_beta=0.1 * jax.random.normal(keys[7], (C,), jnp.float32),
        bn_s_mean=0.1 * jax.random.normal(keys[8], (C,), jnp.float32),
        bn_s_var=jax.random.uniform(keys[9], (C,), jnp.float32, 0.5, 1.5),
        n_gamma=jax.random.uniform(keys[10], (D,), jnp.float32, 0.5, 1.5),
        n_beta=0.1 * jax.random.normal(keys[11], (D,), jnp.float32),
        n_mean=0.1 * jax.random.normal(keys[12], (D,), jnp.float32),
        n_var=jax.random.uniform(keys[13], (D,), jnp.float32, 0.5, 1.5),
        w1=jax.random.normal(keys[14], (M, F, D), jnp.float32) / jnp.sqrt(D),
        b1=0.1 * jax.random.normal(keys[15], (M, F), jnp.float32),
        w2=jax.random.normal(keys[16], (M, D, F), jnp.float32) / jnp.sqrt(F),
        b2=0.1 * jax.random.normal(keys[17], (M, D), jnp.float32),
    )
    x = jax.random.normal(keys[18], (B, M, D, N), jnp.float32)

    out = modern_tcn_block(x, params, large_size=K_L, small_size=K_S)
    out = jax.block_until_ready(out)

    ref = block_ref(x, params, large_size=K_L, small_size=K_S)
    assert out.shape == ref.shape, (out.shape, ref.shape)
    max_err = jnp.max(jnp.abs(out - ref))
    assert jnp.allclose(out, ref, atol=1e-4, rtol=1e-4), (
        f"mismatch vs reference, max abs err {max_err}")

    print("KERNEL_OK")
</pallas_src>

<mosaic_0001>
module attributes {stable_mosaic.version = 11 : i64} {
  func.func @_block_kernel(%arg0: i32, %arg1: i32, %arg2: memref<1x1x32x128xf32, #tpu.memory_space<vmem>>, %arg3: memref<1x32x13xf32, #tpu.memory_space<vmem>>, %arg4: memref<1x32x1xf32, #tpu.memory_space<vmem>>, %arg5: memref<32x1xf32, #tpu.memory_space<vmem>>, %arg6: memref<32x1xf32, #tpu.memory_space<vmem>>, %arg7: memref<1x64x32xf32, #tpu.memory_space<vmem>>, %arg8: memref<1x64x1xf32, #tpu.memory_space<vmem>>, %arg9: memref<1x32x64xf32, #tpu.memory_space<vmem>>, %arg10: memref<1x32x1xf32, #tpu.memory_space<vmem>>, %arg11: memref<1x1x32x128xf32, #tpu.memory_space<vmem>>) attributes {dimension_semantics = [#tpu.dimension_semantics<parallel>, #tpu.dimension_semantics<parallel>], iteration_bounds = array<i64: 2, 3>, scalar_prefetch = 0 : i64, scratch_operands = 0 : i64, tpu.core_type = #tpu.core_type<tc>, window_params = [{transform_indices = @transform_0, window_bounds = array<i64: 1, 1, 32, 128>}, {transform_indices = @transform_1, window_bounds = array<i64: 1, 32, 13>}, {transform_indices = @transform_2, window_bounds = array<i64: 1, 32, 1>}, {pipeline_mode = #tpu.pipeline_mode<synchronous>, transform_indices = @transform_3, window_bounds = array<i64: 32, 1>}, {pipeline_mode = #tpu.pipeline_mode<synchronous>, transform_indices = @transform_4, window_bounds = array<i64: 32, 1>}, {transform_indices = @transform_5, window_bounds = array<i64: 1, 64, 32>}, {transform_indices = @transform_6, window_bounds = array<i64: 1, 64, 1>}, {transform_indices = @transform_7, window_bounds = array<i64: 1, 32, 64>}, {transform_indices = @transform_8, window_bounds = array<i64: 1, 32, 1>}, {transform_indices = @transform_9, window_bounds = array<i64: 1, 1, 32, 128>}]} {
    %c0 = arith.constant 0 : index
    %c0_0 = arith.constant 0 : index
    %c0_1 = arith.constant 0 : index
    %c0_2 = arith.constant 0 : index
    %0 = vector.load %arg2[%c0, %c0_0, %c0_1, %c0_2] : memref<1x1x32x128xf32, #tpu.memory_space<vmem>>, vector<1x1x32x128xf32>
    %1 = vector.shape_cast %0 : vector<1x1x32x128xf32> to vector<32x128xf32>
    %cst = arith.constant 0.000000e+00 : f32
    %2 = vector.broadcast %cst : f32 to vector<32x6xf32>
    %3 = tpu.concatenate %2, %1, %2 in 1 : vector<32x6xf32>, vector<32x128xf32>, vector<32x6xf32> -> vector<32x140xf32>
    %c0_3 = arith.constant 0 : index
    %c0_4 = arith.constant 0 : index
    %c0_5 = arith.constant 0 : index
    %4 = vector.load %arg3[%c0_3, %c0_4, %c0_5] : memref<1x32x13xf32, #tpu.memory_space<vmem>>, vector<1x32x13xf32>
    %5 = vector.shape_cast %4 : vector<1x32x13xf32> to vector<32x13xf32>
    %cst_6 = arith.constant 0.000000e+00 : f32
    %6 = vector.broadcast %cst_6 : f32 to vector<32x128xf32>
    %7 = vector.extract_strided_slice %5 {offsets = [0, 0], sizes = [32, 1], strides = [1, 1]} : vector<32x13xf32> to vector<32x1xf32>
    %8 = vector.extract_strided_slice %3 {offsets = [0, 0], sizes = [32, 128], strides = [1, 1]} : vector<32x140xf32> to vector<32x128xf32>
    %9 = vector.broadcast %7 : vector<32x1xf32> to vector<32x128xf32>
    %10 = arith.mulf %9, %8 : vector<32x128xf32>
    %11 = arith.addf %6, %10 : vector<32x128xf32>
    %12 = vector.extract_strided_slice %5 {offsets = [0, 1], sizes = [32, 1], strides = [1, 1]} : vector<32x13xf32> to vector<32x1xf32>
    %13 = vector.extract_strided_slice %3 {offsets = [0, 1], sizes = [32, 128], strides = [1, 1]} : vector<32x140xf32> to vector<32x128xf32>
    %14 = vector.broadcast %12 : vector<32x1xf32> to vector<32x128xf32>
    %15 = arith.mulf %14, %13 : vector<32x128xf32>
    %16 = arith.addf %11, %15 : vector<32x128xf32>
    %17 = vector.extract_strided_slice %5 {offsets = [0, 2], sizes = [32, 1], strides = [1, 1]} : vector<32x13xf32> to vector<32x1xf32>
    %18 = vector.extract_strided_slice %3 {offsets = [0, 2], sizes = [32, 128], strides = [1, 1]} : vector<32x140xf32> to vector<32x128xf32>
    %19 = vector.broadcast %17 : vector<32x1xf32> to vector<32x128xf32>
    %20 = arith.mulf %19, %18 : vector<32x128xf32>
    %21 = arith.addf %16, %20 : vector<32x128xf32>
    %22 = vector.extract_strided_slice %5 {offsets = [0, 3], sizes = [32, 1], strides = [1, 1]} : vector<32x13xf32> to vector<32x1xf32>
    %23 = vector.extract_strided_slice %3 {offsets = [0, 3], sizes = [32, 128], strides = [1, 1]} : vector<32x140xf32> to vector<32x128xf32>
    %24 = vector.broadcast %22 : vector<32x1xf32> to vector<32x128xf32>
    %25 = arith.mulf %24, %23 : vector<32x128xf32>
    %26 = arith.addf %21, %25 : vector<32x128xf32>
    %27 = vector.extract_strided_slice %5 {offsets = [0, 4], sizes = [32, 1], strides = [1, 1]} : vector<32x13xf32> to vector<32x1xf32>
    %28 = vector.extract_strided_slice %3 {offsets = [0, 4], sizes = [32, 128], strides = [1, 1]} : vector<32x140xf32> to vector<32x128xf32>
    %29 = vector.broadcast %27 : vector<32x1xf32> to vector<32x128xf32>
    %30 = arith.mulf %29, %28 : vector<32x128xf32>
    %31 = arith.addf %26, %30 : vector<32x128xf32>
    %32 = vector.extract_strided_slice %5 {offsets = [0, 5], sizes = [32, 1], strides = [1, 1]} : vector<32x13xf32> to vector<32x1xf32>
    %33 = vector.extract_strided_slice %3 {offsets = [0, 5], sizes = [32, 128], strides = [1, 1]} : vector<32x140xf32> to vector<32x128xf32>
    %34 = vector.broadcast %32 : vector<32x1xf32> to vector<32x128xf32>
    %35 = arith.mulf %34, %33 : vector<32x128xf32>
    %36 = arith.addf %31, %35 : vector<32x128xf32>
    %37 = vector.extract_strided_slice %5 {offsets = [0, 6], sizes = [32, 1], strides = [1, 1]} : vector<32x13xf32> to vector<32x1xf32>
    %38 = vector.extract_strided_slice %3 {offsets = [0, 6], sizes = [32, 128], strides = [1, 1]} : vector<32x140xf32> to vector<32x128xf32>
    %39 = vector.broadcast %37 : vector<32x1xf32> to vector<32x128xf32>
    %40 = arith.mulf %39, %38 : vector<32x128xf32>
    %41 = arith.addf %36, %40 : vector<32x128xf32>
    %42 = vector.extract_strided_slice %5 {offsets = [0, 7], sizes = [32, 1], strides = [1, 1]} : vector<32x13xf32> to vector<32x1xf32>
    %43 = vector.extract_strided_slice %3 {offsets = [0, 7], sizes = [32, 128], strides = [1, 1]} : vector<32x140xf32> to vector<32x128xf32>
    %44 = vector.broadcast %42 : vector<32x1xf32> to vector<32x128xf32>
    %45 = arith.mulf %44, %43 : vector<32x128xf32>
    %46 = arith.addf %41, %45 : vector<32x128xf32>
    %47 = vector.extract_strided_slice %5 {offsets = [0, 8], sizes = [32, 1], strides = [1, 1]} : vector<32x13xf32> to vector<32x1xf32>
    %48 = vector.extract_strided_slice %3 {offsets = [0, 8], sizes = [32, 128], strides = [1, 1]} : vector<32x140xf32> to vector<32x128xf32>
    %49 = vector.broadcast %47 : vector<32x1xf32> to vector<32x128xf32>
    %50 = arith.mulf %49, %48 : vector<32x128xf32>
    %51 = arith.addf %46, %50 : vector<32x128xf32>
    %52 = vector.extract_strided_slice %5 {offsets = [0, 9], sizes = [32, 1], strides = [1, 1]} : vector<32x13xf32> to vector<32x1xf32>
    %53 = vector.extract_strided_slice %3 {offsets = [0, 9], sizes = [32, 128], strides = [1, 1]} : vector<32x140xf32> to vector<32x128xf32>
    %54 = vector.broadcast %52 : vector<32x1xf32> to vector<32x128xf32>
    %55 = arith.mulf %54, %53 : vector<32x128xf32>
    %56 = arith.addf %51, %55 : vector<32x128xf32>
    %57 = vector.extract_strided_slice %5 {offsets = [0, 10], sizes = [32, 1], strides = [1, 1]} : vector<32x13xf32> to vector<32x1xf32>
    %58 = vector.extract_strided_slice %3 {offsets = [0, 10], sizes = [32, 128], strides = [1, 1]} : vector<32x140xf32> to vector<32x128xf32>
    %59 = vector.broadcast %57 : vector<32x1xf32> to vector<32x128xf32>
    %60 = arith.mulf %59, %58 : vector<32x128xf32>
    %61 = arith.addf %56, %60 : vector<32x128xf32>
    %62 = vector.extract_strided_slice %5 {offsets = [0, 11], sizes = [32, 1], strides = [1, 1]} : vector<32x13xf32> to vector<32x1xf32>
    %63 = vector.extract_strided_slice %3 {offsets = [0, 11], sizes = [32, 128], strides = [1, 1]} : vector<32x140xf32> to vector<32x128xf32>
    %64 = vector.broadcast %62 : vector<32x1xf32> to vector<32x128xf32>
    %65 = arith.mulf %64, %63 : vector<32x128xf32>
    %66 = arith.addf %61, %65 : vector<32x128xf32>
    %67 = vector.extract_strided_slice %5 {offsets = [0, 12], sizes = [32, 1], strides = [1, 1]} : vector<32x13xf32> to vector<32x1xf32>
    %68 = vector.extract_strided_slice %3 {offsets = [0, 12], sizes = [32, 128], strides = [1, 1]} : vector<32x140xf32> to vector<32x128xf32>
    %69 = vector.broadcast %67 : vector<32x1xf32> to vector<32x128xf32>
    %70 = arith.mulf %69, %68 : vector<32x128xf32>
    %71 = arith.addf %66, %70 : vector<32x128xf32>
    %c0_7 = arith.constant 0 : index
    %c0_8 = arith.constant 0 : index
    %c0_9 = arith.constant 0 : index
    %72 = vector.load %arg4[%c0_7, %c0_8, %c0_9] : memref<1x32x1xf32, #tpu.memory_space<vmem>>, vector<1x32x1xf32>
    %73 = vector.shape_cast %72 : vector<1x32x1xf32> to vector<32x1xf32>
    %74 = vector.broadcast %73 : vector<32x1xf32> to vector<32x128xf32>
    %75 = arith.addf %71, %74 : vector<32x128xf32>
    %c0_10 = arith.constant 0 : index
    %c0_11 = arith.constant 0 : index
    %76 = vector.load %arg5[%c0_10, %c0_11] : memref<32x1xf32, #tpu.memory_space<vmem>>, vector<32x1xf32>
    %77 = vector.broadcast %76 : vector<32x1xf32> to vector<32x128xf32>
    %78 = arith.mulf %75, %77 : vector<32x128xf32>
    %c0_12 = arith.constant 0 : index
    %c0_13 = arith.constant 0 : index
    %79 = vector.load %arg6[%c0_12, %c0_13] : memref<32x1xf32, #tpu.memory_space<vmem>>, vector<32x1xf32>
    %80 = vector.broadcast %79 : vector<32x1xf32> to vector<32x128xf32>
    %81 = arith.addf %78, %80 : vector<32x128xf32>
    %c0_14 = arith.constant 0 : index
    %c0_15 = arith.constant 0 : index
    %c0_16 = arith.constant 0 : index
    %82 = vector.load %arg7[%c0_14, %c0_15, %c0_16] : memref<1x64x32xf32, #tpu.memory_space<vmem>>, vector<1x64x32xf32>
    %83 = vector.shape_cast %82 : vector<1x64x32xf32> to vector<64x32xf32>
    %cst_17 = arith.constant dense<0.000000e+00> : vector<64x128xf32>
    %84 = tpu.matmul %83, %81, %cst_17 {dimension_numbers = #tpu.dot_dimension_numbers<[1], [0], [0], [1], [0, 0, 1, 1], [], []>} : vector<64x32xf32>, vector<32x128xf32>, vector<64x128xf32> -> vector<64x128xf32>
    %c0_18 = arith.constant 0 : index
    %c0_19 = arith.constant 0 : index
    %c0_20 = arith.constant 0 : index
    %85 = vector.load %arg8[%c0_18, %c0_19, %c0_20] : memref<1x64x1xf32, #tpu.memory_space<vmem>>, vector<1x64x1xf32>
    %86 = vector.shape_cast %85 : vector<1x64x1xf32> to vector<64x1xf32>
    %87 = vector.broadcast %86 : vector<64x1xf32> to vector<64x128xf32>
    %88 = arith.addf %84, %87 : vector<64x128xf32>
    %cst_21 = arith.constant 5.000000e-01 : f32
    %89 = vector.broadcast %cst_21 : f32 to vector<64x128xf32>
    %90 = arith.mulf %89, %88 : vector<64x128xf32>
    %cst_22 = arith.constant 0.707106769 : f32
    %91 = vector.broadcast %cst_22 : f32 to vector<64x128xf32>
    %92 = arith.mulf %88, %91 : vector<64x128xf32>
    %cst_23 = arith.constant 0.000000e+00 : f32
    %93 = vector.broadcast %cst_23 : f32 to vector<64x128xf32>
    %94 = arith.cmpf olt, %92, %93 : vector<64x128xf32>
    %cst_24 = arith.constant -1.000000e+00 : f32
    %cst_25 = arith.constant 1.000000e+00 : f32
    %95 = vector.broadcast %cst_24 : f32 to vector<64x128xf32>
    %96 = vector.broadcast %cst_25 : f32 to vector<64x128xf32>
    %97 = arith.select %94, %95, %96 : vector<64x128xi1>, vector<64x128xf32>
    %98 = math.absf %92 : vector<64x128xf32>
    %cst_26 = arith.constant 0.327591091 : f32
    %99 = vector.broadcast %cst_26 : f32 to vector<64x128xf32>
    %100 = arith.mulf %99, %98 : vector<64x128xf32>
    %cst_27 = arith.constant 1.000000e+00 : f32
    %101 = vector.broadcast %cst_27 : f32 to vector<64x128xf32>
    %102 = arith.addf %101, %100 : vector<64x128xf32>
    %cst_28 = arith.constant 1.000000e+00 : f32
    %103 = vector.broadcast %cst_28 : f32 to vector<64x128xf32>
    %104 = arith.divf %103, %102 : vector<64x128xf32>
    %cst_29 = arith.constant 1.06140542 : f32
    %105 = vector.broadcast %cst_29 : f32 to vector<64x128xf32>
    %106 = arith.mulf %105, %104 : vector<64x128xf32>
    %cst_30 = arith.constant -1.45315206 : f32
    %107 = vector.broadcast %cst_30 : f32 to vector<64x128xf32>
    %108 = arith.addf %106, %107 : vector<64x128xf32>
    %109 = arith.mulf %108, %104 : vector<64x128xf32>
    %cst_31 = arith.constant 1.42141378 : f32
    %110 = vector.broadcast %cst_31 : f32 to vector<64x128xf32>
    %111 = arith.addf %109, %110 : vector<64x128xf32>
    %112 = arith.mulf %111, %104 : vector<64x128xf32>
    %cst_32 = arith.constant -0.284496725 : f32
    %113 = vector.broadcast %cst_32 : f32 to vector<64x128xf32>
    %114 = arith.addf %112, %113 : vector<64x128xf32>
    %115 = arith.mulf %114, %104 : vector<64x128xf32>
    %cst_33 = arith.constant 0.254829586 : f32
    %116 = vector.broadcast %cst_33 : f32 to vector<64x128xf32>
    %117 = arith.addf %115, %116 : vector<64x128xf32>
    %118 = arith.mulf %117, %104 : vector<64x128xf32>
    %cst_34 = arith.constant 0.000000e+00 : f32
    %119 = vector.broadcast %cst_34 : f32 to vector<64x128xf32>
    %120 = arith.subf %119, %98 : vector<64x128xf32>
    %121 = arith.mulf %120, %98 : vector<64x128xf32>
    %122 = math.exp %121 : vector<64x128xf32>
    %123 = arith.mulf %118, %122 : vector<64x128xf32>
    %cst_35 = arith.constant 1.000000e+00 : f32
    %124 = vector.broadcast %cst_35 : f32 to vector<64x128xf32>
    %125 = arith.subf %124, %123 : vector<64x128xf32>
    %126 = arith.mulf %97, %125 : vector<64x128xf32>
    %cst_36 = arith.constant 1.000000e+00 : f32
    %127 = vector.broadcast %cst_36 : f32 to vector<64x128xf32>
    %128 = arith.addf %127, %126 : vector<64x128xf32>
    %129 = arith.mulf %90, %128 : vector<64x128xf32>
    %c0_37 = arith.constant 0 : index
    %c0_38 = arith.constant 0 : index
    %c0_39 = arith.constant 0 : index
    %130 = vector.load %arg9[%c0_37, %c0_38, %c0_39] : memref<1x32x64xf32, #tpu.memory_space<vmem>>, vector<1x32x64xf32>
    %131 = vector.shape_cast %130 : vector<1x32x64xf32> to vector<32x64xf32>
    %cst_40 = arith.constant dense<0.000000e+00> : vector<32x128xf32>
    %132 = tpu.matmul %131, %129, %cst_40 {dimension_numbers = #tpu.dot_dimension_numbers<[1], [0], [0], [1], [0, 0, 1, 1], [], []>} : vector<32x64xf32>, vector<64x128xf32>, vector<32x128xf32> -> vector<32x128xf32>
    %c0_41 = arith.constant 0 : index
    %c0_42 = arith.constant 0 : index
    %c0_43 = arith.constant 0 : index
    %133 = vector.load %arg10[%c0_41, %c0_42, %c0_43] : memref<1x32x1xf32, #tpu.memory_space<vmem>>, vector<1x32x1xf32>
    %134 = vector.shape_cast %133 : vector<1x32x1xf32> to vector<32x1xf32>
    %135 = vector.broadcast %134 : vector<32x1xf32> to vector<32x128xf32>
    %136 = arith.addf %132, %135 : vector<32x128xf32>
    %137 = arith.addf %1, %136 : vector<32x128xf32>
    %c0_44 = arith.constant 0 : index
    %c0_45 = arith.constant 0 : index
    %c0_46 = arith.constant 0 : index
    %c0_47 = arith.constant 0 : index
    %138 = vector.load %arg11[%c0_44, %c0_45, %c0_46, %c0_47] : memref<1x1x32x128xf32, #tpu.memory_space<vmem>>, vector<1x1x32x128xf32>
    %139 = vector.shape_cast %138 : vector<1x1x32x128xf32> to vector<32x128xf32>
    %140 = vector.shape_cast %137 : vector<32x128xf32> to vector<1x1x32x128xf32>
    tpu.vector_store %arg11[%c0_44, %c0_45, %c0_46, %c0_47], %140 {strides = array<i32>} : memref<1x1x32x128xf32, #tpu.memory_space<vmem>>, vector<1x1x32x128xf32>,
    return
  }
  func.func @transform_0(%arg0: i32, %arg1: i32) -> (i32, i32, i32, i32) {
    %c0_i32 = arith.constant 0 : i32
    %c0_i32_0 = arith.constant 0 : i32
    %c0_i32_1 = arith.constant 0 : i32
    return %arg0, %arg1, %c0_i32, %c0_i32_0 : i32, i32, i32, i32
  }
  func.func @transform_1(%arg0: i32, %arg1: i32) -> (i32, i32, i32) {
    %c0_i32 = arith.constant 0 : i32
    %c0_i32_0 = arith.constant 0 : i32
    %c0_i32_1 = arith.constant 0 : i32
    return %arg1, %c0_i32, %c0_i32_0 : i32, i32, i32
  }
  func.func @transform_2(%arg0: i32, %arg1: i32) -> (i32, i32, i32) {
    %c0_i32 = arith.constant 0 : i32
    %c0_i32_0 = arith.constant 0 : i32
    %c0_i32_1 = arith.constant 0 : i32
    return %arg1, %c0_i32, %c0_i32_0 : i32, i32, i32
  }
  func.func @transform_3(%arg0: i32, %arg1: i32) -> (i32, i32) {
    %c0_i32 = arith.constant 0 : i32
    %c0_i32_0 = arith.constant 0 : i32
    %c0_i32_1 = arith.constant 0 : i32
    return %c0_i32, %c0_i32_0 : i32, i32
  }
  func.func @transform_4(%arg0: i32, %arg1: i32) -> (i32, i32) {
    %c0_i32 = arith.constant 0 : i32
    %c0_i32_0 = arith.constant 0 : i32
    %c0_i32_1 = arith.constant 0 : i32
    return %c0_i32, %c0_i32_0 : i32, i32
  }
  func.func @transform_5(%arg0: i32, %arg1: i32) -> (i32, i32, i32) {
    %c0_i32 = arith.constant 0 : i32
    %c0_i32_0 = arith.constant 0 : i32
    %c0_i32_1 = arith.constant 0 : i32
    return %arg1, %c0_i32, %c0_i32_0 : i32, i32, i32
  }
  func.func @transform_6(%arg0: i32, %arg1: i32) -> (i32, i32, i32) {
    %c0_i32 = arith.constant 0 : i32
    %c0_i32_0 = arith.constant 0 : i32
    %c0_i32_1 = arith.constant 0 : i32
    return %arg1, %c0_i32, %c0_i32_0 : i32, i32, i32
  }
  func.func @transform_7(%arg0: i32, %arg1: i32) -> (i32, i32, i32) {
    %c0_i32 = arith.constant 0 : i32
    %c0_i32_0 = arith.constant 0 : i32
    %c0_i32_1 = arith.constant 0 : i32
    return %arg1, %c0_i32, %c0_i32_0 : i32, i32, i32
  }
  func.func @transform_8(%arg0: i32, %arg1: i32) -> (i32, i32, i32) {
    %c0_i32 = arith.constant 0 : i32
    %c0_i32_0 = arith.constant 0 : i32
    %c0_i32_1 = arith.constant 0 : i32
    return %arg1, %c0_i32, %c0_i32_0 : i32, i32, i32
  }
  func.func @transform_9(%arg0: i32, %arg1: i32) -> (i32, i32, i32, i32) {
    %c0_i32 = arith.constant 0 : i32
    %c0_i32_0 = arith.constant 0 : i32
    %c0_i32_1 = arith.constant 0 : i32
    return %arg0, %arg1, %c0_i32, %c0_i32_0 : i32, i32, i32, i32
  }
}

</mosaic_0001>

<llo_original>
// kernel: tpu_custom_call.1
$region0: #{tpu_custom_call.1}
  #allocation0 [shape = 'u32[]', space=smem, size = 0x4, offset = 0x4, fixed_abs, tag = 'smem constant byte address 0x4 - core index']
  #allocation1 [shape = 'u32[72,128]{1,0:T(1,128)}', space=vmem, size = 0x9000, scoped, tag = 'internal scratch']
  %s0 = inlined_call_operand.vmem [shape: f32[2,3,32,128], index: 0, kind: input, shape index: {}]
  %s1 = inlined_call_operand.vmem [shape: f32[3,32,13], index: 1, kind: input, shape index: {}]
  %s2 = inlined_call_operand.vmem [shape: f32[3,32,1], index: 2, kind: input, shape index: {}]
  %s3 = inlined_call_operand.vmem [shape: f32[32,1], index: 3, kind: input, shape index: {}]
  %s4 = inlined_call_operand.vmem [shape: f32[32,1], index: 4, kind: input, shape index: {}]
  %s5 = inlined_call_operand.vmem [shape: f32[3,64,32], index: 5, kind: input, shape index: {}]
  %s6 = inlined_call_operand.vmem [shape: f32[3,64,1], index: 6, kind: input, shape index: {}]
  %s7 = inlined_call_operand.vmem [shape: f32[3,32,64], index: 7, kind: input, shape index: {}]
  %s8 = inlined_call_operand.vmem [shape: f32[3,32,1], index: 8, kind: input, shape index: {}]
  %s9 = inlined_call_operand.hbm [shape: f32[2,3,32,128], index: 9, kind: output, shape index: {}]
  %s10 = sld [smem:[#allocation0]]
  $region69: #{tpu_custom_call.1} parent=0
    _
  %s12 = ssub.s32 1, %s10
  %s13 = scalar_select 0, %s12, %s10
  $region1: #{tpu_custom_call.1} parent=0
    #allocation2 [shape = 'u8[32768]{0}', space=vmem, size = 0x8000, scoped, tag = 'output window, operand 0']
    #allocation3 [shape = 's32[2]{0}', space=sflag, size = 0x8, scoped, tag = 'scoped memory for tpu_custom_call.1']
    %14 = vsyncpa [#allocation3], 0
    %s15 = scalar_lea.sflag [#allocation3], 1
    %16 = vsyncpa %s15, 0
    loop: start=0, step=1, limit=8
    $region2: #{tpu_custom_call.1} parent=1 // loop_pre_header
      _
    $region3: #{tpu_custom_call.1} parent=1 // loop_header
      %s18 = sphi 0, %s22
      %p19 = scmp.ge.s32.totalorder %s18, 8
      %s25 = sphi 0, %s37
      %s26 = sphi 0, %s33
      %s27 = sphi 0, %s25
      %s28 = sphi 0, %s26
      %s29 = sphi 0, %s27
      %s30 = sphi 0, %s28
      %s42 = sphi 0, %s44
      %s45 = sphi 0, %s42
      %s46 = sphi 0, %s45
      %s62 = sphi 0, %s46
      %s68 = sphi 0, %s70
      %s71 = sphi 0, %s68
      %s72 = sphi 0, %s71
      %s88 = sphi 0, %s72
      %s94 = sphi 0, %s96
      %s97 = sphi 0, %s94
      %s98 = sphi 0, %s97
      %s114 = sphi 0, %s98
      %s118 = sphi 0, %s118
      %s120 = sphi 0, %s118
      %s121 = sphi 0, %s120
      %s135 = sphi 0, %s121
      %s139 = sphi 0, %s139
      %s141 = sphi 0, %s139
      %s142 = sphi 0, %s141
      %s156 = sphi 0, %s142
      %s162 = sphi 0, %s164
      %s165 = sphi 0, %s162
      %s166 = sphi 0, %s165
      %s182 = sphi 0, %s166
      %s188 = sphi 0, %s190
      %s191 = sphi 0, %s188
      %s192 = sphi 0, %s191
      %s208 = sphi 0, %s192
      %s214 = sphi 0, %s216
      %s217 = sphi 0, %s214
      %s218 = sphi 0, %s217
      %s234 = sphi 0, %s218
      %s240 = sphi 0, %s242
      %s243 = sphi 0, %s240
      %s244 = sphi 0, %s243
      %s260 = sphi 0, %s244
      %s268 = sphi 0, %s270
      %s271 = sphi 0, %s268
      %s272 = sphi 0, %s271
      %s288 = sphi 0, %s272
    $region4: #{tpu_custom_call.1} parent=1 // loop_header_branch
      %21 = sbr.rel (%p19) target = $region8
    $region5: #{tpu_custom_call.1} parent=1 // loop_body
      %s23 = ssub.s32 %s18, 1
      %s24 = ssub.s32 %s18, 2
      %s31 = sadd.s32 1, %s26
      %p32 = scmp.ge.s32.totalorder %s31, 3
      %s33 = scalar_select %p32, 0, %s31
      %s34 = sadd.s32 1, %s25
      %s35 = scalar_select %p32, %s34, %s25
      %p36 = scmp.ge.s32.totalorder %s35, 2
      %s37 = scalar_select %p36, 0, %s35
      %s38 = ssub.s32 %s25, %s37
      %s39 = ssub.s32 %s26, %s33
      %s40 = sor.u32 %s38, %s39
      %p41 = scmp.eq.s32.totalorder %s40, 0
      %s43 = sadd.s32 %s42, 1
      %s44 = scalar_select %p41, %s42, %s43
      %p47 = pneg %p41
      %p48 = scmp.eq.s32.totalorder %s18, 5
      %p49 = por %p47, %p48
      %p50 = scmp.ne.s32.totalorder %s42, %s45
      %p51 = scmp.eq.s32.totalorder %s18, 0
      %p52 = por %p50, %p51
      %p53 = scmp.ne.s32.totalorder %s42, %s45
      %p54 = scmp.eq.s32.totalorder %s23, 5
      %p55 = por %p53, %p54
      %p56 = scmp.ne.s32.totalorder %s45, %s46
      %p57 = scmp.eq.s32.totalorder %s23, 0
      %p58 = por %p56, %p57
      %p59 = scmp.ne.s32.totalorder %s45, %s46
      %p60 = scmp.eq.s32.totalorder %s24, 5
      %p61 = por %p59, %p60
      %p63 = scmp.ne.s32.totalorder %s46, %s62
      %p64 = scmp.eq.s32.totalorder %s24, 0
      %p65 = por %p63, %p64
      %s66 = ssub.s32 %s26, %s33
      %p67 = scmp.eq.s32.totalorder %s66, 0
      %s69 = sadd.s32 %s68, 1
      %s70 = scalar_select %p67, %s68, %s69
      %p73 = pneg %p67
      %p74 = scmp.eq.s32.totalorder %s18, 5
      %p75 = por %p73, %p74
      %p76 = scmp.ne.s32.totalorder %s68, %s71
      %p77 = scmp.eq.s32.totalorder %s18, 0
      %p78 = por %p76, %p77
      %p79 = scmp.ne.s32.totalorder %s68, %s71
      %p80 = scmp.eq.s32.totalorder %s23, 5
      %p81 = por %p79, %p80
      %p82 = scmp.ne.s32.totalorder %s71, %s72
      %p83 = scmp.eq.s32.totalorder %s23, 0
      %p84 = por %p82, %p83
      %p85 = scmp.ne.s32.totalorder %s71, %s72
      %p86 = scmp.eq.s32.totalorder %s24, 5
      %p87 = por %p85, %p86
      %p89 = scmp.ne.s32.totalorder %s72, %s88
      %p90 = scmp.eq.s32.totalorder %s24, 0
      %p91 = por %p89, %p90
      %s92 = ssub.s32 %s26, %s33
      %p93 = scmp.eq.s32.totalorder %s92, 0
      %s95 = sadd.s32 %s94, 1
      %s96 = scalar_select %p93, %s94, %s95
      %p99 = pneg %p93
      %p100 = scmp.eq.s32.totalorder %s18, 5
      %p101 = por %p99, %p100
      %p102 = scmp.ne.s32.totalorder %s94, %s97
      %p103 = scmp.eq.s32.totalorder %s18, 0
      %p104 = por %p102, %p103
      %p105 = scmp.ne.s32.totalorder %s94, %s97
      %p106 = scmp.eq.s32.totalorder %s23, 5
      %p107 = por %p105, %p106
      %p108 = scmp.ne.s32.totalorder %s97, %s98
      %p109 = scmp.eq.s32.totalorder %s23, 0
      %p110 = por %p108, %p109
      %p111 = scmp.ne.s32.totalorder %s97, %s98
      %p112 = scmp.eq.s32.totalorder %s24, 5
      %p113 = por %p111, %p112
      %p115 = scmp.ne.s32.totalorder %s98, %s114
      %p116 = scmp.eq.s32.totalorder %s24, 0
      %p117 = por %p115, %p116
      %s119 = sadd.s32 %s118, 1
      %p122 = scmp.eq.s32.totalorder %s18, 5
      %p123 = scmp.ne.s32.totalorder %s118, %s120
      %p124 = scmp.eq.s32.totalorder %s18, 0
      %p125 = por %p123, %p124
      %p126 = scmp.ne.s32.totalorder %s118, %s120
      %p127 = scmp.eq.s32.totalorder %s23, 5
      %p128 = por %p126, %p127
      %p129 = scmp.ne.s32.totalorder %s120, %s121
      %p130 = scmp.eq.s32.totalorder %s23, 0
      %p131 = por %p129, %p130
      %p132 = scmp.ne.s32.totalorder %s120, %s121
      %p133 = scmp.eq.s32.totalorder %s24, 5
      %p134 = por %p132, %p133
      %p136 = scmp.ne.s32.totalorder %s121, %s135
      %p137 = scmp.eq.s32.totalorder %s24, 0
      %p138 = por %p136, %p137
      %s140 = sadd.s32 %s139, 1
      %p143 = scmp.eq.s32.totalorder %s18, 5
      %p144 = scmp.ne.s32.totalorder %s139, %s141
      %p145 = scmp.eq.s32.totalorder %s18, 0
      %p146 = por %p144, %p145
      %p147 = scmp.ne.s32.totalorder %s139, %s141
      %p148 = scmp.eq.s32.totalorder %s23, 5
      %p149 = por %p147, %p148
      %p150 = scmp.ne.s32.totalorder %s141, %s142
      %p151 = scmp.eq.s32.totalorder %s23, 0
      %p152 = por %p150, %p151
      %p153 = scmp.ne.s32.totalorder %s141, %s142
      %p154 = scmp.eq.s32.totalorder %s24, 5
      %p155 = por %p153, %p154
      %p157 = scmp.ne.s32.totalorder %s142, %s156
      %p158 = scmp.eq.s32.totalorder %s24, 0
      %p159 = por %p157, %p158
      %s160 = ssub.s32 %s26, %s33
      %p161 = scmp.eq.s32.totalorder %s160, 0
      %s163 = sadd.s32 %s162, 1
      %s164 = scalar_select %p161, %s162, %s163
      %p167 = pneg %p161
      %p168 = scmp.eq.s32.totalorder %s18, 5
      %p169 = por %p167, %p168
      %p170 = scmp.ne.s32.totalorder %s162, %s165
      %p171 = scmp.eq.s32.totalorder %s18, 0
      %p172 = por %p170, %p171
      %p173 = scmp.ne.s32.totalorder %s162, %s165
      %p174 = scmp.eq.s32.totalorder %s23, 5
      %p175 = por %p173, %p174
      %p176 = scmp.ne.s32.totalorder %s165, %s166
      %p177 = scmp.eq.s32.totalorder %s23, 0
      %p178 = por %p176, %p177
      %p179 = scmp.ne.s32.totalorder %s165, %s166
      %p180 = scmp.eq.s32.totalorder %s24, 5
      %p181 = por %p179, %p180
      %p183 = scmp.ne.s32.totalorder %s166, %s182
      %p184 = scmp.eq.s32.totalorder %s24, 0
      %p185 = por %p183, %p184
      %s186 = ssub.s32 %s26, %s33
      %p187 = scmp.eq.s32.totalorder %s186, 0
      %s189 = sadd.s32 %s188, 1
      %s190 = scalar_select %p187, %s188, %s189
      %p193 = pneg %p187
      %p194 = scmp.eq.s32.totalorder %s18, 5
      %p195 = por %p193, %p194
      %p196 = scmp.ne.s32.totalorder %s188, %s191
      %p197 = scmp.eq.s32.totalorder %s18, 0
      %p198 = por %p196, %p197
      %p199 = scmp.ne.s32.totalorder %s188, %s191
      %p200 = scmp.eq.s32.totalorder %s23, 5
      %p201 = por %p199, %p200
      %p202 = scmp.ne.s32.totalorder %s191, %s192
      %p203 = scmp.eq.s32.totalorder %s23, 0
      %p204 = por %p202, %p203
      %p205 = scmp.ne.s32.totalorder %s191, %s192
      %p206 = scmp.eq.s32.totalorder %s24, 5
      %p207 = por %p205, %p206
      %p209 = scmp.ne.s32.totalorder %s192, %s208
      %p210 = scmp.eq.s32.totalorder %s24, 0
      %p211 = por %p209, %p210
      %s212 = ssub.s32 %s26, %s33
      %p213 = scmp.eq.s32.totalorder %s212, 0
      %s215 = sadd.s32 %s214, 1
      %s216 = scalar_select %p213, %s214, %s215
      %p219 = pneg %p213
      %p220 = scmp.eq.s32.totalorder %s18, 5
      %p221 = por %p219, %p220
      %p222 = scmp.ne.s32.totalorder %s214, %s217
      %p223 = scmp.eq.s32.totalorder %s18, 0
      %p224 = por %p222, %p223
      %p225 = scmp.ne.s32.totalorder %s214, %s217
      %p226 = scmp.eq.s32.totalorder %s23, 5
      %p227 = por %p225, %p226
      %p228 = scmp.ne.s32.totalorder %s217, %s218
      %p229 = scmp.eq.s32.totalorder %s23, 0
      %p230 = por %p228, %p229
      %p231 = scmp.ne.s32.totalorder %s217, %s218
      %p232 = scmp.eq.s32.totalorder %s24, 5
      %p233 = por %p231, %p232
      %p235 = scmp.ne.s32.totalorder %s218, %s234
      %p236 = scmp.eq.s32.totalorder %s24, 0
      %p237 = por %p235, %p236
      %s238 = ssub.s32 %s26, %s33
      %p239 = scmp.eq.s32.totalorder %s238, 0
      %s241 = sadd.s32 %s240, 1
      %s242 = scalar_select %p239, %s240, %s241
      %p245 = pneg %p239
      %p246 = scmp.eq.s32.totalorder %s18, 5
      %p247 = por %p245, %p246
      %p248 = scmp.ne.s32.totalorder %s240, %s243
      %p249 = scmp.eq.s32.totalorder %s18, 0
      %p250 = por %p248, %p249
      %p251 = scmp.ne.s32.totalorder %s240, %s243
      %p252 = scmp.eq.s32.totalorder %s23, 5
      %p253 = por %p251, %p252
      %p254 = scmp.ne.s32.totalorder %s243, %s244
      %p255 = scmp.eq.s32.totalorder %s23, 0
      %p256 = por %p254, %p255
      %p257 = scmp.ne.s32.totalorder %s243, %s244
      %p258 = scmp.eq.s32.totalorder %s24, 5
      %p259 = por %p257, %p258
      %p261 = scmp.ne.s32.totalorder %s244, %s260
      %p262 = scmp.eq.s32.totalorder %s24, 0
      %p263 = por %p261, %p262
      %s264 = ssub.s32 %s25, %s37
      %s265 = ssub.s32 %s26, %s33
      %s266 = sor.u32 %s264, %s265
      %p267 = scmp.eq.s32.totalorder %s266, 0
      %s269 = sadd.s32 %s268, 1
      %s270 = scalar_select %p267, %s268, %s269
      %p273 = pneg %p267
      %p274 = scmp.eq.s32.totalorder %s18, 5
      %p275 = por %p273, %p274
      %p276 = scmp.ne.s32.totalorder %s268, %s271
      %p277 = scmp.eq.s32.totalorder %s18, 0
      %p278 = por %p276, %p277
      %p279 = scmp.ne.s32.totalorder %s268, %s271
      %p280 = scmp.eq.s32.totalorder %s23, 5
      %p281 = por %p279, %p280
      %p282 = scmp.ne.s32.totalorder %s271, %s272
      %p283 = scmp.eq.s32.totalorder %s23, 0
      %p284 = por %p282, %p283
      %p285 = scmp.ne.s32.totalorder %s271, %s272
      %p286 = scmp.eq.s32.totalorder %s24, 5
      %p287 = por %p285, %p286
      %p289 = scmp.ne.s32.totalorder %s272, %s288
      %p290 = scmp.eq.s32.totalorder %s24, 0
      %p291 = por %p289, %p290
      %p292 = scmp.le.s32.totalorder 1, %s18
      %p293 = scmp.lt.s32.totalorder %s18, 7
      %p294 = pnand %p292, %p293
      %p295 = pneg %p294
      // Predicated region
      $region9: #{tpu_custom_call.1} parent=5 // pred_check
        _
      $region10: #{tpu_custom_call.1} parent=5 // pred_check_branch
        %297 = sbr.rel (%p294) target = $region12
      $region11: #{tpu_custom_call.1} parent=5 // pred_region
        %s298 = ssub.s32 %s18, 1
        // Predicated region
        $region13: #{tpu_custom_call.1} parent=11 // pred_check
          %p299 = pneg %p131
        $region14: #{tpu_custom_call.1} parent=11 // pred_check_branch
          %301 = sbr.rel (%p299) target = $region16
        $region15: #{tpu_custom_call.1} parent=11 // pred_region
          _
        $region16: #{tpu_custom_call.1} parent=11 // pred_fallthru
          _
        // Predicated region
        $region17: #{tpu_custom_call.1} parent=11 // pred_check
          %p302 = pneg %p152
        $region18: #{tpu_custom_call.1} parent=11 // pred_check_branch
          %304 = sbr.rel (%p302) target = $region20
        $region19: #{tpu_custom_call.1} parent=11 // pred_region
          _
        $region20: #{tpu_custom_call.1} parent=11 // pred_fallthru
          _
      $region12: #{tpu_custom_call.1} parent=5 // pred_fallthru
        _
      %p305 = scmp.lt.s32.totalorder %s18, 6
      // Predicated region
      $region21: #{tpu_custom_call.1} parent=5 // pred_check
        %p306 = pneg %p305
      $region22: #{tpu_custom_call.1} parent=5 // pred_check_branch
        %308 = sbr.rel (%p306) target = $region24
      $region23: #{tpu_custom_call.1} parent=5 // pred_region
        // Predicated region
        $region25: #{tpu_custom_call.1} parent=23 // pred_check
          %p309 = pneg %p52
        $region26: #{tpu_custom_call.1} parent=23 // pred_check_branch
          %311 = sbr.rel (%p309) target = $region28
        $region27: #{tpu_custom_call.1} parent=23 // pred_region
          %p312 = scmp.lt.s32.totalorder %s25, 1
          %s313 = scalar_select %p312, %s25, 1
          %p314 = scmp.lt.s32.totalorder %s26, 2
          %s315 = scalar_select %p314, %s26, 2
          %s316 = smul.addr %s315, 4
          %s317 = smul.addr %s313, 12
          %s318 = sadd.s32 %s316, %s317
          %s319 = smul.addr %s318, 8
          %s320 = scalar_lea.vmem %s0, %s319
        $region28: #{tpu_custom_call.1} parent=23 // pred_fallthru
          _
        // Predicated region
        $region29: #{tpu_custom_call.1} parent=23 // pred_check
          %p321 = pneg %p78
        $region30: #{tpu_custom_call.1} parent=23 // pred_check_branch
          %323 = sbr.rel (%p321) target = $region32
        $region31: #{tpu_custom_call.1} parent=23 // pred_region
          %p324 = scmp.lt.s32.totalorder %s26, 2
          %s325 = scalar_select %p324, %s26, 2
          %s326 = smul.addr %s325, 4
          %s327 = smul.addr %s326, 8
          %s328 = scalar_lea.vmem %s1, %s327
        $region32: #{tpu_custom_call.1} parent=23 // pred_fallthru
          _
        // Predicated region
        $region33: #{tpu_custom_call.1} parent=23 // pred_check
          %p329 = pneg %p104
        $region34: #{tpu_custom_call.1} parent=23 // pred_check_branch
          %331 = sbr.rel (%p329) target = $region36
        $region35: #{tpu_custom_call.1} parent=23 // pred_region
          %p332 = scmp.lt.s32.totalorder %s26, 2
          %s333 = scalar_select %p332, %s26, 2
          %s334 = smul.addr %s333, 4
          %s335 = smul.addr %s334, 8
          %s336 = scalar_lea.vmem %s2, %s335
        $region36: #{tpu_custom_call.1} parent=23 // pred_fallthru
          _
        // Predicated region
        $region37: #{tpu_custom_call.1} parent=23 // pred_check
          %p337 = pneg %p172
        $region38: #{tpu_custom_call.1} parent=23 // pred_check_branch
          %339 = sbr.rel (%p337) target = $region40
        $region39: #{tpu_custom_call.1} parent=23 // pred_region
          %p340 = scmp.lt.s32.totalorder %s26, 2
          %s341 = scalar_select %p340, %s26, 2
          %s342 = smul.addr %s341, 8
          %s343 = smul.addr %s342, 8
          %s344 = scalar_lea.vmem %s5, %s343
        $region40: #{tpu_custom_call.1} parent=23 // pred_fallthru
          _
        // Predicated region
        $region41: #{tpu_custom_call.1} parent=23 // pred_check
          %p345 = pneg %p198
        $region42: #{tpu_custom_call.1} parent=23 // pred_check_branch
          %347 = sbr.rel (%p345) target = $region44
        $region43: #{tpu_custom_call.1} parent=23 // pred_region
          %p348 = scmp.lt.s32.totalorder %s26, 2
          %s349 = scalar_select %p348, %s26, 2
          %s350 = smul.addr %s349, 8
          %s351 = smul.addr %s350, 8
          %s352 = scalar_lea.vmem %s6, %s351
        $region44: #{tpu_custom_call.1} parent=23 // pred_fallthru
          _
        // Predicated region
        $region45: #{tpu_custom_call.1} parent=23 // pred_check
          %p353 = pneg %p224
        $region46: #{tpu_custom_call.1} parent=23 // pred_check_branch
          %355 = sbr.rel (%p353) target = $region48
        $region47: #{tpu_custom_call.1} parent=23 // pred_region
          %p356 = scmp.lt.s32.totalorder %s26, 2
          %s357 = scalar_select %p356, %s26, 2
          %s358 = smul.addr %s357, 4
          %s359 = smul.addr %s358, 8
          %s360 = scalar_lea.vmem %s7, %s359
        $region48: #{tpu_custom_call.1} parent=23 // pred_fallthru
          _
        // Predicated region
        $region49: #{tpu_custom_call.1} parent=23 // pred_check
          %p361 = pneg %p250
        $region50: #{tpu_custom_call.1} parent=23 // pred_check_branch
          %363 = sbr.rel (%p361) target = $region52
        $region51: #{tpu_custom_call.1} parent=23 // pred_region
          %p364 = scmp.lt.s32.totalorder %s26, 2
          %s365 = scalar_select %p364, %s26, 2
          %s366 = smul.addr %s365, 4
          %s367 = smul.addr %s366, 8
          %s368 = scalar_lea.vmem %s8, %s367
        $region52: #{tpu_custom_call.1} parent=23 // pred_fallthru
          _
      $region24: #{tpu_custom_call.1} parent=5 // pred_fallthru
        _
      %p369 = scmp.le.s32.totalorder 1, %s18
      %p370 = scmp.lt.s32.totalorder %s18, 7
      %p371 = pnand %p369, %p370
      %p372 = pneg %p371
      // Predicated region
      $region53: #{tpu_custom_call.1} parent=5 // pred_check
        _
      $region54: #{tpu_custom_call.1} parent=5 // pred_check_branch
        %374 = sbr.rel (%p371) target = $region56
      $region55: #{tpu_custom_call.1} parent=5 // pred_region
        %s375 = ssub.s32 %s18, 1
        %p376 = scmp.lt.s32.totalorder %s27, 1
        %s377 = scalar_select %p376, %s27, 1
        %p378 = scmp.lt.s32.totalorder %s28, 2
        %s379 = scalar_select %p378, %s28, 2
        %s380 = smul.addr %s379, 4
        %s381 = smul.addr %s377, 12
        %s382 = sadd.s32 %s380, %s381
        %s383 = smul.addr %s382, 8
        %s384 = scalar_lea.vmem %s0, %s383
        %p385 = pneg %p58
        %p386 = pneg %p55
        %p387 = scmp.lt.s32.totalorder %s28, 2
        %s388 = scalar_select %p387, %s28, 2
        %s389 = smul.addr %s388, 4
        %s390 = smul.addr %s389, 8
        %s391 = scalar_lea.vmem %s1, %s390
        %p392 = pneg %p84
        %p393 = pneg %p81
        %p394 = scmp.lt.s32.totalorder %s28, 2
        %s395 = scalar_select %p394, %s28, 2
        %s396 = smul.addr %s395, 4
        %s397 = smul.addr %s396, 8
        %s398 = scalar_lea.vmem %s2, %s397
        %p399 = pneg %p110
        %p400 = pneg %p107
        %p401 = pneg %p131
        %p402 = pneg %p128
        %p403 = pneg %p152
        %p404 = pneg %p149
        %p405 = scmp.lt.s32.totalorder %s28, 2
        %s406 = scalar_select %p405, %s28, 2
        %s407 = smul.addr %s406, 8
        %s408 = smul.addr %s407, 8
        %s409 = scalar_lea.vmem %s5, %s408
        %p410 = pneg %p178
        %p411 = pneg %p175
        %p412 = scmp.lt.s32.totalorder %s28, 2
        %s413 = scalar_select %p412, %s28, 2
        %s414 = smul.addr %s413, 8
        %s415 = smul.addr %s414, 8
        %s416 = scalar_lea.vmem %s6, %s415
        %p417 = pneg %p204
        %p418 = pneg %p201
        %p419 = scmp.lt.s32.totalorder %s28, 2
        %s420 = scalar_select %p419, %s28, 2
        %s421 = smul.addr %s420, 4
        %s422 = smul.addr %s421, 8
        %s423 = scalar_lea.vmem %s7, %s422
        %p424 = pneg %p230
        %p425 = pneg %p227
        %p426 = scmp.lt.s32.totalorder %s28, 2
        %s427 = scalar_select %p426, %s28, 2
        %s428 = smul.addr %s427, 4
        %s429 = smul.addr %s428, 8
        %s430 = scalar_lea.vmem %s8, %s429
        %p431 = pneg %p256
        %p432 = pneg %p253
        %p433 = pneg %p284
        %p434 = pneg %p281
        %s435 = sand.u32 %s271, 1
        %s436 = scalar_lea.sflag [#allocation3], %s435
        %s437 = sand.u32 %s271, 1
        %s438 = smul.addr %s437, 32
        %s439 = scalar_lea.vmem [#allocation2], %s438
        %p440 = scmp.lt.s32.totalorder %s27, 1
        %s441 = scalar_select %p440, %s27, 1
        %p442 = scmp.lt.s32.totalorder %s28, 2
        %s443 = scalar_select %p442, %s28, 2
        %s444 = smul.addr %s443, 4
        %s445 = smul.addr %s441, 12
        %s446 = sadd.s32 %s444, %s445
        %s447 = smul.addr %s446, 8
        %s448 = scalar_lea.vmem %s0, %s447
        %p449 = scmp.lt.s32.totalorder %s28, 2
        %s450 = scalar_select %p449, %s28, 2
        %s451 = smul.addr %s450, 4
        %s452 = smul.addr %s451, 8
        %s453 = scalar_lea.vmem %s1, %s452
        %p454 = scmp.lt.s32.totalorder %s28, 2
        %s455 = scalar_select %p454, %s28, 2
        %s456 = smul.addr %s455, 4
        %s457 = smul.addr %s456, 8
        %s458 = scalar_lea.vmem %s2, %s457
        %p459 = scmp.lt.s32.totalorder %s28, 2
        %s460 = scalar_select %p459, %s28, 2
        %s461 = smul.addr %s460, 8
        %s462 = smul.addr %s461, 8
        %s463 = scalar_lea.vmem %s5, %s462
        %p464 = scmp.lt.s32.totalorder %s28, 2
        %s465 = scalar_select %p464, %s28, 2
        %s466 = smul.addr %s465, 8
        %s467 = smul.addr %s466, 8
        %s468 = scalar_lea.vmem %s6, %s467
        %p469 = scmp.lt.s32.totalorder %s28, 2
        %s470 = scalar_select %p469, %s28, 2
        %s471 = smul.addr %s470, 4
        %s472 = smul.addr %s471, 8
        %s473 = scalar_lea.vmem %s7, %s472
        %p474 = scmp.lt.s32.totalorder %s28, 2
        %s475 = scalar_select %p474, %s28, 2
        %s476 = smul.addr %s475, 4
        %s477 = smul.addr %s476, 8
        %s478 = scalar_lea.vmem %s8, %s477
        %v479 = vld [vmem:[%s448] sm:$0xff]
        %v480 = vld [vmem:[%s448 + $0x8] sm:$0xff]
        %v481 = vld [vmem:[%s448 + $0x10] sm:$0xff]
        %v482 = vld [vmem:[%s448 + $0x18] sm:$0xff]
        %487 = vrot.lane.b32.xlu0 %v479, 6
        %v488 = vpop.permute.xlu0 %487
        %489 = vrot.lane.b32.xlu0 %v480, 6
        %v490 = vpop.permute.xlu0 %489
        %491 = vrot.lane.b32.xlu0 %v481, 6
        %v492 = vpop.permute.xlu0 %491
        %493 = vrot.lane.b32.xlu0 %v482, 6
        %v494 = vpop.permute.xlu0 %493
        %vm499 = vcmask 48128
        %v500 = vsel %vm499, 0.0, %v488
        %v501 = vsel %vm499, 0.0, %v490
        %v502 = vsel %vm499, 0.0, %v492
        %v503 = vsel %vm499, 0.0, %v494
        %v504 = vsel %vm499, %v488, 0.0
        %v505 = vsel %vm499, %v490, 0.0
        %v506 = vsel %vm499, %v492, 0.0
        %v507 = vsel %vm499, %v494, 0.0
        %v508 = vld [vmem:[%s453] sm:$0xff]
        %v509 = vld [vmem:[%s453 + $0x8] sm:$0xff]
        %v510 = vld [vmem:[%s453 + $0x10] sm:$0xff]
        %v511 = vld [vmem:[%s453 + $0x18] sm:$0xff]
        %513 = vset.pattern.permute.xlu0 0
        %514 = vperm.xlu0 %513, %v508
        %v515 = vpop.permute.xlu0 %514
        %518 = vset.pattern.permute.xlu0 0
        %519 = vperm.xlu0 %518, %v509
        %v520 = vpop.permute.xlu0 %519
        %523 = vset.pattern.permute.xlu0 0
        %524 = vperm.xlu0 %523, %v510
        %v525 = vpop.permute.xlu0 %524
        %528 = vset.pattern.permute.xlu0 0
        %529 = vperm.xlu0 %528, %v511
        %v530 = vpop.permute.xlu0 %529
        %v532 = vmul.f32 %v515, %v500
        %v533 = vmul.f32 %v520, %v501
        %v534 = vmul.f32 %v525, %v502
        %v535 = vmul.f32 %v530, %v503
        %v536 = vadd.f32 %v532, 0.0
        %v537 = vadd.f32 %v533, 0.0
        %v538 = vadd.f32 %v534, 0.0
        %v539 = vadd.f32 %v535, 0.0
        %540 = vset.pattern.permute.xlu0 1
        %541 = vperm.xlu0 %540, %v508
        %v542 = vpop.permute.xlu0 %541
        %544 = vset.pattern.permute.xlu0 1
        %545 = vperm.xlu0 %544, %v509
        %v546 = vpop.permute.xlu0 %545
        %548 = vset.pattern.permute.xlu0 1
        %549 = vperm.xlu0 %548, %v510
        %v550 = vpop.permute.xlu0 %549
        %552 = vset.pattern.permute.xlu0 1
        %553 = vperm.xlu0 %552, %v511
        %v554 = vpop.permute.xlu0 %553
        %v556 = vmul.f32 %v542, %v500
        %v557 = vmul.f32 %v542, %v504
        %v558 = vmul.f32 %v546, %v501
        %v559 = vmul.f32 %v546, %v505
        %v560 = vmul.f32 %v550, %v502
        %v561 = vmul.f32 %v550, %v506
        %v562 = vmul.f32 %v554, %v503
        %v563 = vmul.f32 %v554, %v507
        %572 = vrot.lane.b32.xlu0 %v556, 127
        %v573 = vpop.permute.xlu0 %572
        %574 = vrot.lane.b32.xlu0 %v557, 127
        %v575 = vpop.permute.xlu0 %574
        %576 = vrot.lane.b32.xlu0 %v558, 127
        %v577 = vpop.permute.xlu0 %576
        %578 = vrot.lane.b32.xlu0 %v559, 127
        %v579 = vpop.permute.xlu0 %578
        %580 = vrot.lane.b32.xlu0 %v560, 127
        %v581 = vpop.permute.xlu0 %580
        %582 = vrot.lane.b32.xlu0 %v561, 127
        %v583 = vpop.permute.xlu0 %582
        %584 = vrot.lane.b32.xlu0 %v562, 127
        %v585 = vpop.permute.xlu0 %584
        %586 = vrot.lane.b32.xlu0 %v563, 127
        %v587 = vpop.permute.xlu0 %586
        %vm588 = vcmask 1039360
        %v589 = vsel %vm588, %v573, %v575
        %v590 = vsel %vm588, %v577, %v579
        %v591 = vsel %vm588, %v581, %v583
        %v592 = vsel %vm588, %v585, %v587
        %v597 = vadd.f32 %v536, %v589
        %v598 = vadd.f32 %v537, %v590
        %v599 = vadd.f32 %v538, %v591
        %v600 = vadd.f32 %v539, %v592
        %601 = vset.pattern.permute.xlu0 2
        %602 = vperm.xlu0 %601, %v508
        %v603 = vpop.permute.xlu0 %602
        %605 = vset.pattern.permute.xlu0 2
        %606 = vperm.xlu0 %605, %v509
        %v607 = vpop.permute.xlu0 %606
        %609 = vset.pattern.permute.xlu0 2
        %610 = vperm.xlu0 %609, %v510
        %v611 = vpop.permute.xlu0 %610
        %613 = vset.pattern.permute.xlu0 2
        %614 = vperm.xlu0 %613, %v511
        %v615 = vpop.permute.xlu0 %614
        %v617 = vmul.f32 %v603, %v500
        %v618 = vmul.f32 %v603, %v504
        %v619 = vmul.f32 %v607, %v501
        %v620 = vmul.f32 %v607, %v505
        %v621 = vmul.f32 %v611, %v502
        %v622 = vmul.f32 %v611, %v506
        %v623 = vmul.f32 %v615, %v503
        %v624 = vmul.f32 %v615, %v507
        %633 = vrot.lane.b32.xlu0 %v617, 126
        %v634 = vpop.permute.xlu0 %633
        %635 = vrot.lane.b32.xlu0 %v618, 126
        %v636 = vpop.permute.xlu0 %635
        %637 = vrot.lane.b32.xlu0 %v619, 126
        %v638 = vpop.permute.xlu0 %637
        %639 = vrot.lane.b32.xlu0 %v620, 126
        %v640 = vpop.permute.xlu0 %639
        %641 = vrot.lane.b32.xlu0 %v621, 126
        %v642 = vpop.permute.xlu0 %641
        %643 = vrot.lane.b32.xlu0 %v622, 126
        %v644 = vpop.permute.xlu0 %643
        %645 = vrot.lane.b32.xlu0 %v623, 126
        %v646 = vpop.permute.xlu0 %645
        %647 = vrot.lane.b32.xlu0 %v624, 126
        %v648 = vpop.permute.xlu0 %647
        %vm649 = vcmask 1031168
        %v650 = vsel %vm649, %v634, %v636
        %v651 = vsel %vm649, %v638, %v640
        %v652 = vsel %vm649, %v642, %v644
        %v653 = vsel %vm649, %v646, %v648
        %v658 = vadd.f32 %v597, %v650
        %v659 = vadd.f32 %v598, %v651
        %v660 = vadd.f32 %v599, %v652
        %v661 = vadd.f32 %v600, %v653
        %662 = vset.pattern.permute.xlu0 3
        %663 = vperm.xlu0 %662, %v508
        %v664 = vpop.permute.xlu0 %663
        %666 = vset.pattern.permute.xlu0 3
        %667 = vperm.xlu0 %666, %v509
        %v668 = vpop.permute.xlu0 %667
        %670 = vset.pattern.permute.xlu0 3
        %671 = vperm.xlu0 %670, %v510
        %v672 = vpop.permute.xlu0 %671
        %674 = vset.pattern.permute.xlu0 3
        %675 = vperm.xlu0 %674, %v511
        %v676 = vpop.permute.xlu0 %675
        %v678 = vmul.f32 %v664, %v500
        %v679 = vmul.f32 %v664, %v504
        %v680 = vmul.f32 %v668, %v501
        %v681 = vmul.f32 %v668, %v505
        %v682 = vmul.f32 %v672, %v502
        %v683 = vmul.f32 %v672, %v506
        %v684 = vmul.f32 %v676, %v503
        %v685 = vmul.f32 %v676, %v507
        %694 = vrot.lane.b32.xlu0 %v678, 125
        %v695 = vpop.permute.xlu0 %694
        %696 = vrot.lane.b32.xlu0 %v679, 125
        %v697 = vpop.permute.xlu0 %696
        %698 = vrot.lane.b32.xlu0 %v680, 125
        %v699 = vpop.permute.xlu0 %698
        %700 = vrot.lane.b32.xlu0 %v681, 125
        %v701 = vpop.permute.xlu0 %700
        %702 = vrot.lane.b32.xlu0 %v682, 125
        %v703 = vpop.permute.xlu0 %702
        %704 = vrot.lane.b32.xlu0 %v683, 125
        %v705 = vpop.permute.xlu0 %704
        %706 = vrot.lane.b32.xlu0 %v684, 125
        %v707 = vpop.permute.xlu0 %706
        %708 = vrot.lane.b32.xlu0 %v685, 125
        %v709 = vpop.permute.xlu0 %708
        %vm710 = vcmask 1022976
        %v711 = vsel %vm710, %v695, %v697
        %v712 = vsel %vm710, %v699, %v701
        %v713 = vsel %vm710, %v703, %v705
        %v714 = vsel %vm710, %v707, %v709
        %v719 = vadd.f32 %v658, %v711
        %v720 = vadd.f32 %v659, %v712
        %v721 = vadd.f32 %v660, %v713
        %v722 = vadd.f32 %v661, %v714
        %723 = vset.pattern.permute.xlu0 4
        %724 = vperm.xlu0 %723, %v508
        %v725 = vpop.permute.xlu0 %724
        %727 = vset.pattern.permute.xlu0 4
        %728 = vperm.xlu0 %727, %v509
        %v729 = vpop.permute.xlu0 %728
        %731 = vset.pattern.permute.xlu0 4
        %732 = vperm.xlu0 %731, %v510
        %v733 = vpop.permute.xlu0 %732
        %735 = vset.pattern.permute.xlu0 4
        %736 = vperm.xlu0 %735, %v511
        %v737 = vpop.permute.xlu0 %736
        %v739 = vmul.f32 %v725, %v500
        %v740 = vmul.f32 %v725, %v504
        %v741 = vmul.f32 %v729, %v501
        %v742 = vmul.f32 %v729, %v505
        %v743 = vmul.f32 %v733, %v502
        %v744 = vmul.f32 %v733, %v506
        %v745 = vmul.f32 %v737, %v503
        %v746 = vmul.f32 %v737, %v507
        %755 = vrot.lane.b32.xlu0 %v739, 124
        %v756 = vpop.permute.xlu0 %755
        %757 = vrot.lane.b32.xlu0 %v740, 124
        %v758 = vpop.permute.xlu0 %757
        %759 = vrot.lane.b32.xlu0 %v741, 124
        %v760 = vpop.permute.xlu0 %759
        %761 = vrot.lane.b32.xlu0 %v742, 124
        %v762 = vpop.permute.xlu0 %761
        %763 = vrot.lane.b32.xlu0 %v743, 124
        %v764 = vpop.permute.xlu0 %763
        %765 = vrot.lane.b32.xlu0 %v744, 124
        %v766 = vpop.permute.xlu0 %765
        %767 = vrot.lane.b32.xlu0 %v745, 124
        %v768 = vpop.permute.xlu0 %767
        %769 = vrot.lane.b32.xlu0 %v746, 124
        %v770 = vpop.permute.xlu0 %769
        %vm771 = vcmask 1014784
        %v772 = vsel %vm771, %v756, %v758
        %v773 = vsel %vm771, %v760, %v762
        %v774 = vsel %vm771, %v764, %v766
        %v775 = vsel %vm771, %v768, %v770
        %v780 = vadd.f32 %v719, %v772
        %v781 = vadd.f32 %v720, %v773
        %v782 = vadd.f32 %v721, %v774
        %v783 = vadd.f32 %v722, %v775
        %784 = vset.pattern.permute.xlu0 5
        %785 = vperm.xlu0 %784, %v508
        %v786 = vpop.permute.xlu0 %785
        %788 = vset.pattern.permute.xlu0 5
        %789 = vperm.xlu0 %788, %v509
        %v790 = vpop.permute.xlu0 %789
        %792 = vset.pattern.permute.xlu0 5
        %793 = vperm.xlu0 %792, %v510
        %v794 = vpop.permute.xlu0 %793
        %796 = vset.pattern.permute.xlu0 5
        %797 = vperm.xlu0 %796, %v511
        %v798 = vpop.permute.xlu0 %797
        %v800 = vmul.f32 %v786, %v500
        %v801 = vmul.f32 %v786, %v504
        %v802 = vmul.f32 %v790, %v501
        %v803 = vmul.f32 %v790, %v505
        %v804 = vmul.f32 %v794, %v502
        %v805 = vmul.f32 %v794, %v506
        %v806 = vmul.f32 %v798, %v503
        %v807 = vmul.f32 %v798, %v507
        %816 = vrot.lane.b32.xlu0 %v800, 123
        %v817 = vpop.permute.xlu0 %816
        %818 = vrot.lane.b32.xlu0 %v801, 123
        %v819 = vpop.permute.xlu0 %818
        %820 = vrot.lane.b32.xlu0 %v802, 123
        %v821 = vpop.permute.xlu0 %820
        %822 = vrot.lane.b32.xlu0 %v803, 123
        %v823 = vpop.permute.xlu0 %822
        %824 = vrot.lane.b32.xlu0 %v804, 123
        %v825 = vpop.permute.xlu0 %824
        %826 = vrot.lane.b32.xlu0 %v805, 123
        %v827 = vpop.permute.xlu0 %826
        %828 = vrot.lane.b32.xlu0 %v806, 123
        %v829 = vpop.permute.xlu0 %828
        %830 = vrot.lane.b32.xlu0 %v807, 123
        %v831 = vpop.permute.xlu0 %830
        %vm832 = vcmask 1006592
        %v833 = vsel %vm832, %v817, %v819
        %v834 = vsel %vm832, %v821, %v823
        %v835 = vsel %vm832, %v825, %v827
        %v836 = vsel %vm832, %v829, %v831
        %v841 = vadd.f32 %v780, %v833
        %v842 = vadd.f32 %v781, %v834
        %v843 = vadd.f32 %v782, %v835
        %v844 = vadd.f32 %v783, %v836
        %845 = vset.pattern.permute.xlu0 6
        %846 = vperm.xlu0 %845, %v508
        %v847 = vpop.permute.xlu0 %846
        %849 = vset.pattern.permute.xlu0 6
        %850 = vperm.xlu0 %849, %v509
        %v851 = vpop.permute.xlu0 %850
        %853 = vset.pattern.permute.xlu0 6
        %854 = vperm.xlu0 %853, %v510
        %v855 = vpop.permute.xlu0 %854
        %857 = vset.pattern.permute.xlu0 6
        %858 = vperm.xlu0 %857, %v511
        %v859 = vpop.permute.xlu0 %858
        %v861 = vmul.f32 %v847, %v500
        %v862 = vmul.f32 %v847, %v504
        %v863 = vmul.f32 %v851, %v501
        %v864 = vmul.f32 %v851, %v505
        %v865 = vmul.f32 %v855, %v502
        %v866 = vmul.f32 %v855, %v506
        %v867 = vmul.f32 %v859, %v503
        %v868 = vmul.f32 %v859, %v507
        %877 = vrot.lane.b32.xlu0 %v861, 122
        %v878 = vpop.permute.xlu0 %877
        %879 = vrot.lane.b32.xlu0 %v862, 122
        %v880 = vpop.permute.xlu0 %879
        %881 = vrot.lane.b32.xlu0 %v863, 122
        %v882 = vpop.permute.xlu0 %881
        %883 = vrot.lane.b32.xlu0 %v864, 122
        %v884 = vpop.permute.xlu0 %883
        %885 = vrot.lane.b32.xlu0 %v865, 122
        %v886 = vpop.permute.xlu0 %885
        %887 = vrot.lane.b32.xlu0 %v866, 122
        %v888 = vpop.permute.xlu0 %887
        %889 = vrot.lane.b32.xlu0 %v867, 122
        %v890 = vpop.permute.xlu0 %889
        %891 = vrot.lane.b32.xlu0 %v868, 122
        %v892 = vpop.permute.xlu0 %891
        %vm893 = vcmask 998400
        %v894 = vsel %vm893, %v878, %v880
        %v895 = vsel %vm893, %v882, %v884
        %v896 = vsel %vm893, %v886, %v888
        %v897 = vsel %vm893, %v890, %v892
        %v902 = vadd.f32 %v841, %v894
        %v903 = vadd.f32 %v842, %v895
        %v904 = vadd.f32 %v843, %v896
        %v905 = vadd.f32 %v844, %v897
        %906 = vset.pattern.permute.xlu0 7
        %907 = vperm.xlu0 %906, %v508
        %v908 = vpop.permute.xlu0 %907
        %910 = vset.pattern.permute.xlu0 7
        %911 = vperm.xlu0 %910, %v509
        %v912 = vpop.permute.xlu0 %911
        %914 = vset.pattern.permute.xlu0 7
        %915 = vperm.xlu0 %914, %v510
        %v916 = vpop.permute.xlu0 %915
        %918 = vset.pattern.permute.xlu0 7
        %919 = vperm.xlu0 %918, %v511
        %v920 = vpop.permute.xlu0 %919
        %v922 = vmul.f32 %v908, %v500
        %v923 = vmul.f32 %v908, %v504
        %v924 = vmul.f32 %v912, %v501
        %v925 = vmul.f32 %v912, %v505
        %v926 = vmul.f32 %v916, %v502
        %v927 = vmul.f32 %v916, %v506
        %v928 = vmul.f32 %v920, %v503
        %v929 = vmul.f32 %v920, %v507
        %938 = vrot.lane.b32.xlu0 %v922, 121
        %v939 = vpop.permute.xlu0 %938
        %940 = vrot.lane.b32.xlu0 %v923, 121
        %v941 = vpop.permute.xlu0 %940
        %942 = vrot.lane.b32.xlu0 %v924, 121
        %v943 = vpop.permute.xlu0 %942
        %944 = vrot.lane.b32.xlu0 %v925, 121
        %v945 = vpop.permute.xlu0 %944
        %946 = vrot.lane.b32.xlu0 %v926, 121
        %v947 = vpop.permute.xlu0 %946
        %948 = vrot.lane.b32.xlu0 %v927, 121
        %v949 = vpop.permute.xlu0 %948
        %950 = vrot.lane.b32.xlu0 %v928, 121
        %v951 = vpop.permute.xlu0 %950
        %952 = vrot.lane.b32.xlu0 %v929, 121
        %v953 = vpop.permute.xlu0 %952
        %vm954 = vcmask 990208
        %v955 = vsel %vm954, %v939, %v941
        %v956 = vsel %vm954, %v943, %v945
        %v957 = vsel %vm954, %v947, %v949
        %v958 = vsel %vm954, %v951, %v953
        %v963 = vadd.f32 %v902, %v955
        %v964 = vadd.f32 %v903, %v956
        %v965 = vadd.f32 %v904, %v957
        %v966 = vadd.f32 %v905, %v958
        %967 = vset.pattern.permute.xlu0 8
        %968 = vperm.xlu0 %967, %v508
        %v969 = vpop.permute.xlu0 %968
        %971 = vset.pattern.permute.xlu0 8
        %972 = vperm.xlu0 %971, %v509
        %v973 = vpop.permute.xlu0 %972
        %975 = vset.pattern.permute.xlu0 8
        %976 = vperm.xlu0 %975, %v510
        %v977 = vpop.permute.xlu0 %976
        %979 = vset.pattern.permute.xlu0 8
        %980 = vperm.xlu0 %979, %v511
        %v981 = vpop.permute.xlu0 %980
        %v983 = vmul.f32 %v969, %v500
        %v984 = vmul.f32 %v969, %v504
        %v985 = vmul.f32 %v973, %v501
        %v986 = vmul.f32 %v973, %v505
        %v987 = vmul.f32 %v977, %v502
        %v988 = vmul.f32 %v977, %v506
        %v989 = vmul.f32 %v981, %v503
        %v990 = vmul.f32 %v981, %v507
        %999 = vrot.lane.b32.xlu0 %v983, 120
        %v1000 = vpop.permute.xlu0 %999
        %1001 = vrot.lane.b32.xlu0 %v984, 120
        %v1002 = vpop.permute.xlu0 %1001
        %1003 = vrot.lane.b32.xlu0 %v985, 120
        %v1004 = vpop.permute.xlu0 %1003
        %1005 = vrot.lane.b32.xlu0 %v986, 120
        %v1006 = vpop.permute.xlu0 %1005
        %1007 = vrot.lane.b32.xlu0 %v987, 120
        %v1008 = vpop.permute.xlu0 %1007
        %1009 = vrot.lane.b32.xlu0 %v988, 120
        %v1010 = vpop.permute.xlu0 %1009
        %1011 = vrot.lane.b32.xlu0 %v989, 120
        %v1012 = vpop.permute.xlu0 %1011
        %1013 = vrot.lane.b32.xlu0 %v990, 120
        %v1014 = vpop.permute.xlu0 %1013
        %vm1015 = vcmask 982016
        %v1016 = vsel %vm1015, %v1000, %v1002
        %v1017 = vsel %vm1015, %v1004, %v1006
        %v1018 = vsel %vm1015, %v1008, %v1010
        %v1019 = vsel %vm1015, %v1012, %v1014
        %v1024 = vadd.f32 %v963, %v1016
        %v1025 = vadd.f32 %v964, %v1017
        %v1026 = vadd.f32 %v965, %v1018
        %v1027 = vadd.f32 %v966, %v1019
        %1028 = vset.pattern.permute.xlu0 9
        %1029 = vperm.xlu0 %1028, %v508
        %v1030 = vpop.permute.xlu0 %1029
        %1032 = vset.pattern.permute.xlu0 9
        %1033 = vperm.xlu0 %1032, %v509
        %v1034 = vpop.permute.xlu0 %1033
        %1036 = vset.pattern.permute.xlu0 9
        %1037 = vperm.xlu0 %1036, %v510
        %v1038 = vpop.permute.xlu0 %1037
        %1040 = vset.pattern.permute.xlu0 9
        %1041 = vperm.xlu0 %1040, %v511
        %v1042 = vpop.permute.xlu0 %1041
        %v1044 = vmul.f32 %v1030, %v500
        %v1045 = vmul.f32 %v1030, %v504
        %v1046 = vmul.f32 %v1034, %v501
        %v1047 = vmul.f32 %v1034, %v505
        %v1048 = vmul.f32 %v1038, %v502
        %v1049 = vmul.f32 %v1038, %v506
        %v1050 = vmul.f32 %v1042, %v503
        %v1051 = vmul.f32 %v1042, %v507
        %1060 = vrot.lane.b32.xlu0 %v1044, 119
        %v1061 = vpop.permute.xlu0 %1060
        %1062 = vrot.lane.b32.xlu0 %v1045, 119
        %v1063 = vpop.permute.xlu0 %1062
        %1064 = vrot.lane.b32.xlu0 %v1046, 119
        %v1065 = vpop.permute.xlu0 %1064
        %1066 = vrot.lane.b32.xlu0 %v1047, 119
        %v1067 = vpop.permute.xlu0 %1066
        %1068 = vrot.lane.b32.xlu0 %v1048, 119
        %v1069 = vpop.permute.xlu0 %1068
        %1070 = vrot.lane.b32.xlu0 %v1049, 119
        %v1071 = vpop.permute.xlu0 %1070
        %1072 = vrot.lane.b32.xlu0 %v1050, 119
        %v1073 = vpop.permute.xlu0 %1072
        %1074 = vrot.lane.b32.xlu0 %v1051, 119
        %v1075 = vpop.permute.xlu0 %1074
        %vm1076 = vcmask 973824
        %v1077 = vsel %vm1076, %v1061, %v1063
        %v1078 = vsel %vm1076, %v1065, %v1067
        %v1079 = vsel %vm1076, %v1069, %v1071
        %v1080 = vsel %vm1076, %v1073, %v1075
        %v1085 = vadd.f32 %v1024, %v1077
        %v1086 = vadd.f32 %v1025, %v1078
        %v1087 = vadd.f32 %v1026, %v1079
        %v1088 = vadd.f32 %v1027, %v1080
        %1089 = vset.pattern.permute.xlu0 10
        %1090 = vperm.xlu0 %1089, %v508
        %v1091 = vpop.permute.xlu0 %1090
        %1093 = vset.pattern.permute.xlu0 10
        %1094 = vperm.xlu0 %1093, %v509
        %v1095 = vpop.permute.xlu0 %1094
        %1097 = vset.pattern.permute.xlu0 10
        %1098 = vperm.xlu0 %1097, %v510
        %v1099 = vpop.permute.xlu0 %1098
        %1101 = vset.pattern.permute.xlu0 10
        %1102 = vperm.xlu0 %1101, %v511
        %v1103 = vpop.permute.xlu0 %1102
        %v1105 = vmul.f32 %v1091, %v500
        %v1106 = vmul.f32 %v1091, %v504
        %v1107 = vmul.f32 %v1095, %v501
        %v1108 = vmul.f32 %v1095, %v505
        %v1109 = vmul.f32 %v1099, %v502
        %v1110 = vmul.f32 %v1099, %v506
        %v1111 = vmul.f32 %v1103, %v503
        %v1112 = vmul.f32 %v1103, %v507
        %1121 = vrot.lane.b32.xlu0 %v1105, 118
        %v1122 = vpop.permute.xlu0 %1121
        %1123 = vrot.lane.b32.xlu0 %v1106, 118
        %v1124 = vpop.permute.xlu0 %1123
        %1125 = vrot.lane.b32.xlu0 %v1107, 118
        %v1126 = vpop.permute.xlu0 %1125
        %1127 = vrot.lane.b32.xlu0 %v1108, 118
        %v1128 = vpop.permute.xlu0 %1127
        %1129 = vrot.lane.b32.xlu0 %v1109, 118
        %v1130 = vpop.permute.xlu0 %1129
        %1131 = vrot.lane.b32.xlu0 %v1110, 118
        %v1132 = vpop.permute.xlu0 %1131
        %1133 = vrot.lane.b32.xlu0 %v1111, 118
        %v1134 = vpop.permute.xlu0 %1133
        %1135 = vrot.lane.b32.xlu0 %v1112, 118
        %v1136 = vpop.permute.xlu0 %1135
        %vm1137 = vcmask 965632
        %v1138 = vsel %vm1137, %v1122, %v1124
        %v1139 = vsel %vm1137, %v1126, %v1128
        %v1140 = vsel %vm1137, %v1130, %v1132
        %v1141 = vsel %vm1137, %v1134, %v1136
        %v1146 = vadd.f32 %v1085, %v1138
        %v1147 = vadd.f32 %v1086, %v1139
        %v1148 = vadd.f32 %v1087, %v1140
        %v1149 = vadd.f32 %v1088, %v1141
        %1150 = vset.pattern.permute.xlu0 11
        %1151 = vperm.xlu0 %1150, %v508
        %v1152 = vpop.permute.xlu0 %1151
        %1154 = vset.pattern.permute.xlu0 11
        %1155 = vperm.xlu0 %1154, %v509
        %v1156 = vpop.permute.xlu0 %1155
        %1158 = vset.pattern.permute.xlu0 11
        %1159 = vperm.xlu0 %1158, %v510
        %v1160 = vpop.permute.xlu0 %1159
        %1162 = vset.pattern.permute.xlu0 11
        %1163 = vperm.xlu0 %1162, %v511
        %v1164 = vpop.permute.xlu0 %1163
        %v1166 = vmul.f32 %v1152, %v500
        %v1167 = vmul.f32 %v1152, %v504
        %v1168 = vmul.f32 %v1156, %v501
        %v1169 = vmul.f32 %v1156, %v505
        %v1170 = vmul.f32 %v1160, %v502
        %v1171 = vmul.f32 %v1160, %v506
        %v1172 = vmul.f32 %v1164, %v503
        %v1173 = vmul.f32 %v1164, %v507
        %1182 = vrot.lane.b32.xlu0 %v1166, 117
        %v1183 = vpop.permute.xlu0 %1182
        %1184 = vrot.lane.b32.xlu0 %v1167, 117
        %v1185 = vpop.permute.xlu0 %1184
        %1186 = vrot.lane.b32.xlu0 %v1168, 117
        %v1187 = vpop.permute.xlu0 %1186
        %1188 = vrot.lane.b32.xlu0 %v1169, 117
        %v1189 = vpop.permute.xlu0 %1188
        %1190 = vrot.lane.b32.xlu0 %v1170, 117
        %v1191 = vpop.permute.xlu0 %1190
        %1192 = vrot.lane.b32.xlu0 %v1171, 117
        %v1193 = vpop.permute.xlu0 %1192
        %1194 = vrot.lane.b32.xlu0 %v1172, 117
        %v1195 = vpop.permute.xlu0 %1194
        %1196 = vrot.lane.b32.xlu0 %v1173, 117
        %v1197 = vpop.permute.xlu0 %1196
        %vm1198 = vcmask 957440
        %v1199 = vsel %vm1198, %v1183, %v1185
        %v1200 = vsel %vm1198, %v1187, %v1189
        %v1201 = vsel %vm1198, %v1191, %v1193
        %v1202 = vsel %vm1198, %v1195, %v1197
        %v1207 = vadd.f32 %v1146, %v1199
        %v1208 = vadd.f32 %v1147, %v1200
        %v1209 = vadd.f32 %v1148, %v1201
        %v1210 = vadd.f32 %v1149, %v1202
        %1211 = vset.pattern.permute.xlu0 12
        %1212 = vperm.xlu0 %1211, %v508
        %v1213 = vpop.permute.xlu0 %1212
        %1215 = vset.pattern.permute.xlu0 12
        %1216 = vperm.xlu0 %1215, %v509
        %v1217 = vpop.permute.xlu0 %1216
        %1219 = vset.pattern.permute.xlu0 12
        %1220 = vperm.xlu0 %1219, %v510
        %v1221 = vpop.permute.xlu0 %1220
        %1223 = vset.pattern.permute.xlu0 12
        %1224 = vperm.xlu0 %1223, %v511
        %v1225 = vpop.permute.xlu0 %1224
        %v1227 = vmul.f32 %v1213, %v500
        %v1228 = vmul.f32 %v1213, %v504
        %v1229 = vmul.f32 %v1217, %v501
        %v1230 = vmul.f32 %v1217, %v505
        %v1231 = vmul.f32 %v1221, %v502
        %v1232 = vmul.f32 %v1221, %v506
        %v1233 = vmul.f32 %v1225, %v503
        %v1234 = vmul.f32 %v1225, %v507
        %1243 = vrot.lane.b32.xlu0 %v1227, 116
        %v1244 = vpop.permute.xlu0 %1243
        %1245 = vrot.lane.b32.xlu0 %v1228, 116
        %v1246 = vpop.permute.xlu0 %1245
        %1247 = vrot.lane.b32.xlu0 %v1229, 116
        %v1248 = vpop.permute.xlu0 %1247
        %1249 = vrot.lane.b32.xlu0 %v1230, 116
        %v1250 = vpop.permute.xlu0 %1249
        %1251 = vrot.lane.b32.xlu0 %v1231, 116
        %v1252 = vpop.permute.xlu0 %1251
        %1253 = vrot.lane.b32.xlu0 %v1232, 116
        %v1254 = vpop.permute.xlu0 %1253
        %1255 = vrot.lane.b32.xlu0 %v1233, 116
        %v1256 = vpop.permute.xlu0 %1255
        %1257 = vrot.lane.b32.xlu0 %v1234, 116
        %v1258 = vpop.permute.xlu0 %1257
        %vm1259 = vcmask 949248
        %v1260 = vsel %vm1259, %v1244, %v1246
        %v1261 = vsel %vm1259, %v1248, %v1250
        %v1262 = vsel %vm1259, %v1252, %v1254
        %v1263 = vsel %vm1259, %v1256, %v1258
        %v1268 = vadd.f32 %v1207, %v1260
        %v1269 = vadd.f32 %v1208, %v1261
        %v1270 = vadd.f32 %v1209, %v1262
        %v1271 = vadd.f32 %v1210, %v1263
        %v1272 = vld [vmem:[%s458] sm:$0xff]
        %v1273 = vld [vmem:[%s458 + $0x8] sm:$0xff]
        %v1274 = vld [vmem:[%s458 + $0x10] sm:$0xff]
        %v1275 = vld [vmem:[%s458 + $0x18] sm:$0xff]
        %1277 = vset.pattern.permute.xlu0 0
        %1278 = vperm.xlu0 %1277, %v1272
        %v1279 = vpop.permute.xlu0 %1278
        %1282 = vset.pattern.permute.xlu0 0
        %1283 = vperm.xlu0 %1282, %v1273
        %v1284 = vpop.permute.xlu0 %1283
        %1287 = vset.pattern.permute.xlu0 0
        %1288 = vperm.xlu0 %1287, %v1274
        %v1289 = vpop.permute.xlu0 %1288
        %1292 = vset.pattern.permute.xlu0 0
        %1293 = vperm.xlu0 %1292, %v1275
        %v1294 = vpop.permute.xlu0 %1293
        %v1296 = vadd.f32 %v1268, %v1279
        %v1297 = vadd.f32 %v1269, %v1284
        %v1298 = vadd.f32 %v1270, %v1289
        %v1299 = vadd.f32 %v1271, %v1294
        %v1300 = vld [vmem:[%s3] sm:$0xff]
        %v1301 = vld [vmem:[%s3 + $0x8] sm:$0xff]
        %v1302 = vld [vmem:[%s3 + $0x10] sm:$0xff]
        %v1303 = vld [vmem:[%s3 + $0x18] sm:$0xff]
        %1305 = vset.pattern.permute.xlu0 0
        %1306 = vperm.xlu0 %1305, %v1300
        %v1307 = vpop.permute.xlu0 %1306
        %1310 = vset.pattern.permute.xlu0 0
        %1311 = vperm.xlu0 %1310, %v1301
        %v1312 = vpop.permute.xlu0 %1311
        %1315 = vset.pattern.permute.xlu0 0
        %1316 = vperm.xlu0 %1315, %v1302
        %v1317 = vpop.permute.xlu0 %1316
        %1320 = vset.pattern.permute.xlu0 0
        %1321 = vperm.xlu0 %1320, %v1303
        %v1322 = vpop.permute.xlu0 %1321
        %v1324 = vmul.f32 %v1296, %v1307
        %v1325 = vmul.f32 %v1297, %v1312
        %v1326 = vmul.f32 %v1298, %v1317
        %v1327 = vmul.f32 %v1299, %v1322
        %v1328 = vld [vmem:[%s4] sm:$0xff]
        %v1329 = vld [vmem:[%s4 + $0x8] sm:$0xff]
        %v1330 = vld [vmem:[%s4 + $0x10] sm:$0xff]
        %v1331 = vld [vmem:[%s4 + $0x18] sm:$0xff]
        %1333 = vset.pattern.permute.xlu0 0
        %1334 = vperm.xlu0 %1333, %v1328
        %v1335 = vpop.permute.xlu0 %1334
        %1338 = vset.pattern.permute.xlu0 0
        %1339 = vperm.xlu0 %1338, %v1329
        %v1340 = vpop.permute.xlu0 %1339
        %1343 = vset.pattern.permute.xlu0 0
        %1344 = vperm.xlu0 %1343, %v1330
        %v1345 = vpop.permute.xlu0 %1344
        %1348 = vset.pattern.permute.xlu0 0
        %1349 = vperm.xlu0 %1348, %v1331
        %v1350 = vpop.permute.xlu0 %1349
        %v1352 = vadd.f32 %v1324, %v1335
        %v1353 = vadd.f32 %v1325, %v1340
        %v1354 = vadd.f32 %v1326, %v1345
        %v1355 = vadd.f32 %v1327, %v1350
        %v1356 = vld [vmem:[%s463] sm:$0xff]
        %v1357 = vld [vmem:[%s463 + $0x8] sm:$0xff]
        %v1358 = vld [vmem:[%s463 + $0x10] sm:$0xff]
        %v1359 = vld [vmem:[%s463 + $0x18] sm:$0xff]
        %v1360 = vld [vmem:[%s463 + $0x20] sm:$0xff]
        %v1361 = vld [vmem:[%s463 + $0x28] sm:$0xff]
        %v1362 = vld [vmem:[%s463 + $0x30] sm:$0xff]
        %v1363 = vld [vmem:[%s463 + $0x38] sm:$0xff]
        %v1364 = vld [vmem:[%s468] sm:$0xff]
        %v1365 = vld [vmem:[%s468 + $0x8] sm:$0xff]
        %v1366 = vld [vmem:[%s468 + $0x10] sm:$0xff]
        %v1367 = vld [vmem:[%s468 + $0x18] sm:$0xff]
        %v1368 = vld [vmem:[%s468 + $0x20] sm:$0xff]
        %v1369 = vld [vmem:[%s468 + $0x28] sm:$0xff]
        %v1370 = vld [vmem:[%s468 + $0x30] sm:$0xff]
        %v1371 = vld [vmem:[%s468 + $0x38] sm:$0xff]
        %1373 = vset.pattern.permute.xlu0 0
        %1374 = vperm.xlu0 %1373, %v1364
        %v1375 = vpop.permute.xlu0 %1374
        %1378 = vset.pattern.permute.xlu0 0
        %1379 = vperm.xlu0 %1378, %v1365
        %v1380 = vpop.permute.xlu0 %1379
        %1383 = vset.pattern.permute.xlu0 0
        %1384 = vperm.xlu0 %1383, %v1366
        %v1385 = vpop.permute.xlu0 %1384
        %1388 = vset.pattern.permute.xlu0 0
        %1389 = vperm.xlu0 %1388, %v1367
        %v1390 = vpop.permute.xlu0 %1389
        %1393 = vset.pattern.permute.xlu0 0
        %1394 = vperm.xlu0 %1393, %v1368
        %v1395 = vpop.permute.xlu0 %1394
        %1398 = vset.pattern.permute.xlu0 0
        %1399 = vperm.xlu0 %1398, %v1369
        %v1400 = vpop.permute.xlu0 %1399
        %1403 = vset.pattern.permute.xlu0 0
        %1404 = vperm.xlu0 %1403, %v1370
        %v1405 = vpop.permute.xlu0 %1404
        %1408 = vset.pattern.permute.xlu0 0
        %1409 = vperm.xlu0 %1408, %v1371
        %v1410 = vpop.permute.xlu0 %1409
        %vm1412 = vcmask 261120
        %v1414 = vsel %vm1412, %v1356, 0
        %v1417 = vsel %vm1412, %v1357, 0
        %v1420 = vsel %vm1412, %v1358, 0
        %v1423 = vsel %vm1412, %v1359, 0
        %v1426 = vsel %vm1412, %v1360, 0
        %v1429 = vsel %vm1412, %v1361, 0
        %v1432 = vsel %vm1412, %v1362, 0
        %v1435 = vsel %vm1412, %v1363, 0
        %1437 = vmatpush.msra.mxu0 0.0
        %1438 = vmatpush.msra.mxu0 0.0
        %1439 = vmatpush.msra.mxu0 0.0
        %1440 = vmatpush.msra.mxu0 0.0
        %1441 = vmatpush.msra.mxu0 0.0
        %1442 = vmatpush.msra.mxu0 0.0
        %1443 = vmatpush.msra.mxu0 0.0
        %1444 = vmatpush.msra.mxu0 0.0
        %1445 = vmatpush.msra.mxu0 0.0
        %1446 = vmatpush.msra.mxu0 0.0
        %1447 = vmatpush.msra.mxu0 0.0
        %1448 = vmatpush.msra.mxu0 0.0
        %1449 = vmatpush.msra.mxu0 %v1355
        %1450 = vmatpush.msra.mxu0 %v1354
        %1451 = vmatpush.msra.mxu0 %v1353
        %1452 = vmatpush.msra.mxu0 %v1352
        %1453 = vmatmul.f32.gmra.mxu0 %v1414
        %v1454 = vpop.f32.mrf.mxu0
        %v1455 = vadd.f32 %v1375, %v1454
        %1456 = vmatmul.f32.gmra.mxu0 %v1417
        %v1457 = vpop.f32.mrf.mxu0
        %v1458 = vadd.f32 %v1380, %v1457
        %1459 = vmatmul.f32.gmra.mxu0 %v1420
        %v1460 = vpop.f32.mrf.mxu0
        %v1461 = vadd.f32 %v1385, %v1460
        %1462 = vmatmul.f32.gmra.mxu0 %v1423
        %v1463 = vpop.f32.mrf.mxu0
        %v1464 = vadd.f32 %v1390, %v1463
        %1465 = vmatmul.f32.gmra.mxu0 %v1426
        %v1466 = vpop.f32.mrf.mxu0
        %v1467 = vadd.f32 %v1395, %v1466
        %1468 = vmatmul.f32.gmra.mxu0 %v1429
        %v1469 = vpop.f32.mrf.mxu0
        %v1470 = vadd.f32 %v1400, %v1469
        %1471 = vmatmul.f32.gmra.mxu0 %v1432
        %v1472 = vpop.f32.mrf.mxu0
        %v1473 = vadd.f32 %v1405, %v1472
        %1474 = vmatmul.f32.gmra.mxu0 %v1435
        %v1475 = vpop.f32.mrf.mxu0
        %v1476 = vadd.f32 %v1410, %v1475
        %1477 = vdwg.mxu0
        %v1478 = vmul.f32 %v1455, 0.5
        %v1479 = vmul.f32 %v1458, 0.5
        %v1480 = vmul.f32 %v1461, 0.5
        %v1481 = vmul.f32 %v1464, 0.5
        %v1482 = vmul.f32 %v1467, 0.5
        %v1483 = vmul.f32 %v1470, 0.5
        %v1484 = vmul.f32 %v1473, 0.5
        %v1485 = vmul.f32 %v1476, 0.5
        %v1486 = vmul.f32 %v1455, 0.70710677
        %v1487 = vmul.f32 %v1458, 0.70710677
        %v1488 = vmul.f32 %v1461, 0.70710677
        %v1489 = vmul.f32 %v1464, 0.70710677
        %v1490 = vmul.f32 %v1467, 0.70710677
        %v1491 = vmul.f32 %v1470, 0.70710677
        %v1492 = vmul.f32 %v1473, 0.70710677
        %v1493 = vmul.f32 %v1476, 0.70710677
        %vm1494 = vcmp.lt.f32.partialorder %v1486, 0.0
        %vm1495 = vcmp.lt.f32.partialorder %v1487, 0.0
        %vm1496 = vcmp.lt.f32.partialorder %v1488, 0.0
        %vm1497 = vcmp.lt.f32.partialorder %v1489, 0.0
        %vm1498 = vcmp.lt.f32.partialorder %v1490, 0.0
        %vm1499 = vcmp.lt.f32.partialorder %v1491, 0.0
        %vm1500 = vcmp.lt.f32.partialorder %v1492, 0.0
        %vm1501 = vcmp.lt.f32.partialorder %v1493, 0.0
        %v1502 = vsel %vm1494, -1.0, 1.0
        %v1503 = vsel %vm1495, -1.0, 1.0
        %v1504 = vsel %vm1496, -1.0, 1.0
        %v1505 = vsel %vm1497, -1.0, 1.0
        %v1506 = vsel %vm1498, -1.0, 1.0
        %v1507 = vsel %vm1499, -1.0, 1.0
        %v1508 = vsel %vm1500, -1.0, 1.0
        %v1509 = vsel %vm1501, -1.0, 1.0
        %v1510 = vand.u32 2147483647, %v1486
        %v1511 = vand.u32 2147483647, %v1487
        %v1512 = vand.u32 2147483647, %v1488
        %v1513 = vand.u32 2147483647, %v1489
        %v1514 = vand.u32 2147483647, %v1490
        %v1515 = vand.u32 2147483647, %v1491
        %v1516 = vand.u32 2147483647, %v1492
        %v1517 = vand.u32 2147483647, %v1493
        %v1518 = vmul.f32 %v1510, 0.3275911
        %v1519 = vmul.f32 %v1511, 0.3275911
        %v1520 = vmul.f32 %v1512, 0.3275911
        %v1521 = vmul.f32 %v1513, 0.3275911
        %v1522 = vmul.f32 %v1514, 0.3275911
        %v1523 = vmul.f32 %v1515, 0.3275911
        %v1524 = vmul.f32 %v1516, 0.3275911
        %v1525 = vmul.f32 %v1517, 0.3275911
        %v1526 = vadd.f32 %v1518, 1.0
        %v1527 = vadd.f32 %v1519, 1.0
        %v1528 = vadd.f32 %v1520, 1.0
        %v1529 = vadd.f32 %v1521, 1.0
        %v1530 = vadd.f32 %v1522, 1.0
        %v1531 = vadd.f32 %v1523, 1.0
        %v1532 = vadd.f32 %v1524, 1.0
        %v1533 = vadd.f32 %v1525, 1.0
        %v1534 = vrcp.pop %v1526
        %v1535 = vmul.f32 %v1526, %v1534
        %v1536 = vsub.f32 1.0, %v1535
        %v1537 = vmul.f32 %v1534, %v1536
        %v1538 = vadd.f32 %v1534, %v1537
        %vm1539 = vweird.f32 %v1526
        %vm1540 = vweird.f32 %v1534
        %vm1541 = vmor %vm1539, %vm1540
        %v1542 = vsel %vm1541, %v1534, %v1538
        %v1543 = vand.u32 2147483647, %v1526
        %vm1544 = vcmp.eq.f32.partialorder %v1543, 8.507059e+37
        %v1545 = vand.u32 %v1526, 2147483648
        %v1546 = vor.u32 1.1754944e-38, %v1545
        %v1547 = vsel %vm1544, %v1546, %v1542
        %v1548 = vmul.f32 1.0, %v1547
        %v1549 = vrcp.pop %v1527
        %v1550 = vmul.f32 %v1527, %v1549
        %v1551 = vsub.f32 1.0, %v1550
        %v1552 = vmul.f32 %v1549, %v1551
        %v1553 = vadd.f32 %v1549, %v1552
        %vm1554 = vweird.f32 %v1527
        %vm1555 = vweird.f32 %v1549
        %vm1556 = vmor %vm1554, %vm1555
        %v1557 = vsel %vm1556, %v1549, %v1553
        %v1558 = vand.u32 2147483647, %v1527
        %vm1559 = vcmp.eq.f32.partialorder %v1558, 8.507059e+37
        %v1560 = vand.u32 %v1527, 2147483648
        %v1561 = vor.u32 1.1754944e-38, %v1560
        %v1562 = vsel %vm1559, %v1561, %v1557
        %v1563 = vmul.f32 1.0, %v1562
        %v1564 = vrcp.pop %v1528
        %v1565 = vmul.f32 %v1528, %v1564
        %v1566 = vsub.f32 1.0, %v1565
        %v1567 = vmul.f32 %v1564, %v1566
        %v1568 = vadd.f32 %v1564, %v1567
        %vm1569 = vweird.f32 %v1528
        %vm1570 = vweird.f32 %v1564
        %vm1571 = vmor %vm1569, %vm1570
        %v1572 = vsel %vm1571, %v1564, %v1568
        %v1573 = vand.u32 2147483647, %v1528
        %vm1574 = vcmp.eq.f32.partialorder %v1573, 8.507059e+37
        %v1575 = vand.u32 %v1528, 2147483648
        %v1576 = vor.u32 1.1754944e-38, %v1575
        %v1577 = vsel %vm1574, %v1576, %v1572
        %v1578 = vmul.f32 1.0, %v1577
        %v1579 = vrcp.pop %v1529
        %v1580 = vmul.f32 %v1529, %v1579
        %v1581 = vsub.f32 1.0, %v1580
        %v1582 = vmul.f32 %v1579, %v1581
        %v1583 = vadd.f32 %v1579, %v1582
        %vm1584 = vweird.f32 %v1529
        %vm1585 = vweird.f32 %v1579
        %vm1586 = vmor %vm1584, %vm1585
        %v1587 = vsel %vm1586, %v1579, %v1583
        %v1588 = vand.u32 2147483647, %v1529
        %vm1589 = vcmp.eq.f32.partialorder %v1588, 8.507059e+37
        %v1590 = vand.u32 %v1529, 2147483648
        %v1591 = vor.u32 1.1754944e-38, %v1590
        %v1592 = vsel %vm1589, %v1591, %v1587
        %v1593 = vmul.f32 1.0, %v1592
        %v1594 = vrcp.pop %v1530
        %v1595 = vmul.f32 %v1530, %v1594
        %v1596 = vsub.f32 1.0, %v1595
        %v1597 = vmul.f32 %v1594, %v1596
        %v1598 = vadd.f32 %v1594, %v1597
        %vm1599 = vweird.f32 %v1530
        %vm1600 = vweird.f32 %v1594
        %vm1601 = vmor %vm1599, %vm1600
        %v1602 = vsel %vm1601, %v1594, %v1598
        %v1603 = vand.u32 2147483647, %v1530
        %vm1604 = vcmp.eq.f32.partialorder %v1603, 8.507059e+37
        %v1605 = vand.u32 %v1530, 2147483648
        %v1606 = vor.u32 1.1754944e-38, %v1605
        %v1607 = vsel %vm1604, %v1606, %v1602
        %v1608 = vmul.f32 1.0, %v1607
        %v1609 = vrcp.pop %v1531
        %v1610 = vmul.f32 %v1531, %v1609
        %v1611 = vsub.f32 1.0, %v1610
        %v1612 = vmul.f32 %v1609, %v1611
        %v1613 = vadd.f32 %v1609, %v1612
        %vm1614 = vweird.f32 %v1531
        %vm1615 = vweird.f32 %v1609
        %vm1616 = vmor %vm1614, %vm1615
        %v1617 = vsel %vm1616, %v1609, %v1613
        %v1618 = vand.u32 2147483647, %v1531
        %vm1619 = vcmp.eq.f32.partialorder %v1618, 8.507059e+37
        %v1620 = vand.u32 %v1531, 2147483648
        %v1621 = vor.u32 1.1754944e-38, %v1620
        %v1622 = vsel %vm1619, %v1621, %v1617
        %v1623 = vmul.f32 1.0, %v1622
        %v1624 = vrcp.pop %v1532
        %v1625 = vmul.f32 %v1532, %v1624
        %v1626 = vsub.f32 1.0, %v1625
        %v1627 = vmul.f32 %v1624, %v1626
        %v1628 = vadd.f32 %v1624, %v1627
        %vm1629 = vweird.f32 %v1532
        %vm1630 = vweird.f32 %v1624
        %vm1631 = vmor %vm1629, %vm1630
        %v1632 = vsel %vm1631, %v1624, %v1628
        %v1633 = vand.u32 2147483647, %v1532
        %vm1634 = vcmp.eq.f32.partialorder %v1633, 8.507059e+37
        %v1635 = vand.u32 %v1532, 2147483648
        %v1636 = vor.u32 1.1754944e-38, %v1635
        %v1637 = vsel %vm1634, %v1636, %v1632
        %v1638 = vmul.f32 1.0, %v1637
        %v1639 = vrcp.pop %v1533
        %v1640 = vmul.f32 %v1533, %v1639
        %v1641 = vsub.f32 1.0, %v1640
        %v1642 = vmul.f32 %v1639, %v1641
        %v1643 = vadd.f32 %v1639, %v1642
        %vm1644 = vweird.f32 %v1533
        %vm1645 = vweird.f32 %v1639
        %vm1646 = vmor %vm1644, %vm1645
        %v1647 = vsel %vm1646, %v1639, %v1643
        %v1648 = vand.u32 2147483647, %v1533
        %vm1649 = vcmp.eq.f32.partialorder %v1648, 8.507059e+37
        %v1650 = vand.u32 %v1533, 2147483648
        %v1651 = vor.u32 1.1754944e-38, %v1650
        %v1652 = vsel %vm1649, %v1651, %v1647
        %v1653 = vmul.f32 1.0, %v1652
        %v1654 = vmul.f32 %v1548, 1.0614054
        %v1655 = vmul.f32 %v1563, 1.0614054
        %v1656 = vmul.f32 %v1578, 1.0614054
        %v1657 = vmul.f32 %v1593, 1.0614054
        %v1658 = vmul.f32 %v1608, 1.0614054
        %v1659 = vmul.f32 %v1623, 1.0614054
        %v1660 = vmul.f32 %v1638, 1.0614054
        %v1661 = vmul.f32 %v1653, 1.0614054
        %v1662 = vadd.f32 %v1654, -1.4531521
        %v1663 = vadd.f32 %v1655, -1.4531521
        %v1664 = vadd.f32 %v1656, -1.4531521
        %v1665 = vadd.f32 %v1657, -1.4531521
        %v1666 = vadd.f32 %v1658, -1.4531521
        %v1667 = vadd.f32 %v1659, -1.4531521
        %v1668 = vadd.f32 %v1660, -1.4531521
        %v1669 = vadd.f32 %v1661, -1.4531521
        %v1670 = vmul.f32 %v1662, %v1548
        %v1671 = vmul.f32 %v1663, %v1563
        %v1672 = vmul.f32 %v1664, %v1578
        %v1673 = vmul.f32 %v1665, %v1593
        %v1674 = vmul.f32 %v1666, %v1608
        %v1675 = vmul.f32 %v1667, %v1623
        %v1676 = vmul.f32 %v1668, %v1638
        %v1677 = vmul.f32 %v1669, %v1653
        %v1678 = vadd.f32 %v1670, 1.4214138
        %v1679 = vadd.f32 %v1671, 1.4214138
        %v1680 = vadd.f32 %v1672, 1.4214138
        %v1681 = vadd.f32 %v1673, 1.4214138
        %v1682 = vadd.f32 %v1674, 1.4214138
        %v1683 = vadd.f32 %v1675, 1.4214138
        %v1684 = vadd.f32 %v1676, 1.4214138
        %v1685 = vadd.f32 %v1677, 1.4214138
        %v1686 = vmul.f32 %v1678, %v1548
        %v1687 = vmul.f32 %v1679, %v1563
        %v1688 = vmul.f32 %v1680, %v1578
        %v1689 = vmul.f32 %v1681, %v1593
        %v1690 = vmul.f32 %v1682, %v1608
        %v1691 = vmul.f32 %v1683, %v1623
        %v1692 = vmul.f32 %v1684, %v1638
        %v1693 = vmul.f32 %v1685, %v1653
        %v1694 = vadd.f32 %v1686, -0.28449672
        %v1695 = vadd.f32 %v1687, -0.28449672
        %v1696 = vadd.f32 %v1688, -0.28449672
        %v1697 = vadd.f32 %v1689, -0.28449672
        %v1698 = vadd.f32 %v1690, -0.28449672
        %v1699 = vadd.f32 %v1691, -0.28449672
        %v1700 = vadd.f32 %v1692, -0.28449672
        %v1701 = vadd.f32 %v1693, -0.28449672
        %v1702 = vmul.f32 %v1694, %v1548
        %v1703 = vmul.f32 %v1695, %v1563
        %v1704 = vmul.f32 %v1696, %v1578
        %v1705 = vmul.f32 %v1697, %v1593
        %v1706 = vmul.f32 %v1698, %v1608
        %v1707 = vmul.f32 %v1699, %v1623
        %v1708 = vmul.f32 %v1700, %v1638
        %v1709 = vmul.f32 %v1701, %v1653
        %v1710 = vadd.f32 %v1702, 0.2548296
        %v1711 = vadd.f32 %v1703, 0.2548296
        %v1712 = vadd.f32 %v1704, 0.2548296
        %v1713 = vadd.f32 %v1705, 0.2548296
        %v1714 = vadd.f32 %v1706, 0.2548296
        %v1715 = vadd.f32 %v1707, 0.2548296
        %v1716 = vadd.f32 %v1708, 0.2548296
        %v1717 = vadd.f32 %v1709, 0.2548296
        %v1718 = vmul.f32 %v1710, %v1548
        %v1719 = vmul.f32 %v1711, %v1563
        %v1720 = vmul.f32 %v1712, %v1578
        %v1721 = vmul.f32 %v1713, %v1593
        %v1722 = vmul.f32 %v1714, %v1608
        %v1723 = vmul.f32 %v1715, %v1623
        %v1724 = vmul.f32 %v1716, %v1638
        %v1725 = vmul.f32 %v1717, %v1653
        %v1726 = vsub.f32 0.0, %v1510
        %v1727 = vsub.f32 0.0, %v1511
        %v1728 = vsub.f32 0.0, %v1512
        %v1729 = vsub.f32 0.0, %v1513
        %v1730 = vsub.f32 0.0, %v1514
        %v1731 = vsub.f32 0.0, %v1515
        %v1732 = vsub.f32 0.0, %v1516
        %v1733 = vsub.f32 0.0, %v1517
        %v1734 = vmul.f32 %v1726, %v1510
        %v1735 = vmul.f32 %v1727, %v1511
        %v1736 = vmul.f32 %v1728, %v1512
        %v1737 = vmul.f32 %v1729, %v1513
        %v1738 = vmul.f32 %v1730, %v1514
        %v1739 = vmul.f32 %v1731, %v1515
        %v1740 = vmul.f32 %v1732, %v1516
        %v1741 = vmul.f32 %v1733, %v1517
        %v1742 = vmul.f32 %v1734, 1.442695
        %v1743 = vpow.pop %v1742
        %v1744 = vmul.f32 %v1735, 1.442695
        %v1745 = vpow.pop %v1744
        %v1746 = vmul.f32 %v1736, 1.442695
        %v1747 = vpow.pop %v1746
        %v1748 = vmul.f32 %v1737, 1.442695
        %v1749 = vpow.pop %v1748
        %v1750 = vmul.f32 %v1738, 1.442695
        %v1751 = vpow.pop %v1750
        %v1752 = vmul.f32 %v1739, 1.442695
        %v1753 = vpow.pop %v1752
        %v1754 = vmul.f32 %v1740, 1.442695
        %v1755 = vpow.pop %v1754
        %v1756 = vmul.f32 %v1741, 1.442695
        %v1757 = vpow.pop %v1756
        %v1758 = vmul.f32 %v1718, %v1743
        %v1759 = vmul.f32 %v1719, %v1745
        %v1760 = vmul.f32 %v1720, %v1747
        %v1761 = vmul.f32 %v1721, %v1749
        %v1762 = vmul.f32 %v1722, %v1751
        %v1763 = vmul.f32 %v1723, %v1753
        %v1764 = vmul.f32 %v1724, %v1755
        %v1765 = vmul.f32 %v1725, %v1757
        %v1766 = vsub.f32 1.0, %v1758
        %v1767 = vsub.f32 1.0, %v1759
        %v1768 = vsub.f32 1.0, %v1760
        %v1769 = vsub.f32 1.0, %v1761
        %v1770 = vsub.f32 1.0, %v1762
        %v1771 = vsub.f32 1.0, %v1763
        %v1772 = vsub.f32 1.0, %v1764
        %v1773 = vsub.f32 1.0, %v1765
        %v1774 = vmul.f32 %v1502, %v1766
        %v1775 = vmul.f32 %v1503, %v1767
        %v1776 = vmul.f32 %v1504, %v1768
        %v1777 = vmul.f32 %v1505, %v1769
        %v1778 = vmul.f32 %v1506, %v1770
        %v1779 = vmul.f32 %v1507, %v1771
        %v1780 = vmul.f32 %v1508, %v1772
        %v1781 = vmul.f32 %v1509, %v1773
        %v1782 = vadd.f32 %v1774, 1.0
        %v1783 = vadd.f32 %v1775, 1.0
        %v1784 = vadd.f32 %v1776, 1.0
        %v1785 = vadd.f32 %v1777, 1.0
        %v1786 = vadd.f32 %v1778, 1.0
        %v1787 = vadd.f32 %v1779, 1.0
        %v1788 = vadd.f32 %v1780, 1.0
        %v1789 = vadd.f32 %v1781, 1.0
        %v1790 = vmul.f32 %v1478, %v1782
        %v1791 = vmul.f32 %v1479, %v1783
        %v1792 = vmul.f32 %v1480, %v1784
        %v1793 = vmul.f32 %v1481, %v1785
        %v1794 = vmul.f32 %v1482, %v1786
        %v1795 = vmul.f32 %v1483, %v1787
        %v1796 = vmul.f32 %v1484, %v1788
        %v1797 = vmul.f32 %v1485, %v1789
        %v1798 = vld [vmem:[%s473] sm:$0xff]
        %v1799 = vld [vmem:[%s473 + $0x8] sm:$0xff]
        %v1800 = vld [vmem:[%s473 + $0x10] sm:$0xff]
        %v1801 = vld [vmem:[%s473 + $0x18] sm:$0xff]
        %v1802 = vld [vmem:[%s478] sm:$0xff]
        %v1803 = vld [vmem:[%s478 + $0x8] sm:$0xff]
        %v1804 = vld [vmem:[%s478 + $0x10] sm:$0xff]
        %v1805 = vld [vmem:[%s478 + $0x18] sm:$0xff]
        %1807 = vset.pattern.permute.xlu0 0
        %1808 = vperm.xlu0 %1807, %v1802
        %v1809 = vpop.permute.xlu0 %1808
        %1812 = vset.pattern.permute.xlu0 0
        %1813 = vperm.xlu0 %1812, %v1803
        %v1814 = vpop.permute.xlu0 %1813
        %1817 = vset.pattern.permute.xlu0 0
        %1818 = vperm.xlu0 %1817, %v1804
        %v1819 = vpop.permute.xlu0 %1818
        %1822 = vset.pattern.permute.xlu0 0
        %1823 = vperm.xlu0 %1822, %v1805
        %v1824 = vpop.permute.xlu0 %1823
        %vm1826 = vcmask 523264
        %v1828 = vsel %vm1826, %v1798, 0
        %v1831 = vsel %vm1826, %v1799, 0
        %v1834 = vsel %vm1826, %v1800, 0
        %v1837 = vsel %vm1826, %v1801, 0
        %1839 = vmatpush.msra.mxu0 0.0
        %1840 = vmatpush.msra.mxu0 0.0
        %1841 = vmatpush.msra.mxu0 0.0
        %1842 = vmatpush.msra.mxu0 0.0
        %1843 = vmatpush.msra.mxu0 0.0
        %1844 = vmatpush.msra.mxu0 0.0
        %1845 = vmatpush.msra.mxu0 0.0
        %1846 = vmatpush.msra.mxu0 0.0
        %1847 = vmatpush.msra.mxu0 %v1797
        %1848 = vmatpush.msra.mxu0 %v1796
        %1849 = vmatpush.msra.mxu0 %v1795
        %1850 = vmatpush.msra.mxu0 %v1794
        %1851 = vmatpush.msra.mxu0 %v1793
        %1852 = vmatpush.msra.mxu0 %v1792
        %1853 = vmatpush.msra.mxu0 %v1791
        %1854 = vmatpush.msra.mxu0 %v1790
        %1855 = vmatmul.f32.gmra.mxu0 %v1828
        %v1856 = vpop.f32.mrf.mxu0
        %v1857 = vadd.f32 %v1809, %v1856
        %1858 = vmatmul.f32.gmra.mxu0 %v1831
        %v1859 = vpop.f32.mrf.mxu0
        %v1860 = vadd.f32 %v1814, %v1859
        %1861 = vmatmul.f32.gmra.mxu0 %v1834
        %v1862 = vpop.f32.mrf.mxu0
        %v1863 = vadd.f32 %v1819, %v1862
        %1864 = vmatmul.f32.gmra.mxu0 %v1837
        %v1865 = vpop.f32.mrf.mxu0
        %v1866 = vadd.f32 %v1824, %v1865
        %1867 = vdwg.mxu0
        %v1868 = vadd.f32 %v479, %v1857
        %v1869 = vadd.f32 %v480, %v1860
        %v1870 = vadd.f32 %v481, %v1863
        %v1871 = vadd.f32 %v482, %v1866
        %1872 = vst [vmem:[%s439] sm:$0xff] %v1868
        %1873 = vst [vmem:[%s439 + $0x8] sm:$0xff] %v1869
        %1874 = vst [vmem:[%s439 + $0x10] sm:$0xff] %v1870
        %1875 = vst [vmem:[%s439 + $0x18] sm:$0xff] %v1871
        %s1876 = sand.u32 %s271, 1
        %s1877 = scalar_lea.sflag [#allocation3], %s1876
        %s1878 = sand.u32 %s271, 1
        %s1879 = smul.addr %s1878, 32
        %s1880 = scalar_lea.vmem [#allocation2], %s1879
        // Predicated region
        $region57: #{tpu_custom_call.1} parent=55 // pred_check
          %p1881 = pneg %p281
        $region58: #{tpu_custom_call.1} parent=55 // pred_check_branch
          %1883 = sbr.rel (%p1881) target = $region60
        $region59: #{tpu_custom_call.1} parent=55 // pred_region
          %1885 = vsyncadd %s1877, 0
          %s1886 = smul.addr %s28, 4
          %s1887 = smul.addr %s27, 12
          %s1888 = sadd.s32 %s1886, %s1887
          %s1889 = smul.addr %s1888, 8
          %s1890 = scalar_lea.hbm %s9, %s1889
          %s1891 = sshll.u32 %s1880, 4
          %s1892 = int_to_ptr.vmem [resolvable:$true] %s1891
          %s1893 = sshll.u32 %s1890, 4
          %s1894 = int_to_ptr.hbm [resolvable:$true] %s1893
          %1899 = dma.vmem_to_hbm [thread:$0]  %s1892, 512, %s1894, %s1877, 128, 128, 8
        $region60: #{tpu_custom_call.1} parent=55 // pred_fallthru
          _
      $region56: #{tpu_custom_call.1} parent=5 // pred_fallthru
        _
      %p1900 = scmp.le.s32.totalorder 2, %s18
      // Predicated region
      $region61: #{tpu_custom_call.1} parent=5 // pred_check
        %p1901 = pneg %p1900
      $region62: #{tpu_custom_call.1} parent=5 // pred_check_branch
        %1903 = sbr.rel (%p1901) target = $region64
      $region63: #{tpu_custom_call.1} parent=5 // pred_region
        %s1904 = ssub.s32 %s18, 2
        // Predicated region
        $region65: #{tpu_custom_call.1} parent=63 // pred_check
          %p1905 = pneg %p287
        $region66: #{tpu_custom_call.1} parent=63 // pred_check_branch
          %1907 = sbr.rel (%p1905) target = $region68
        $region67: #{tpu_custom_call.1} parent=63 // pred_region
          %s1908 = sand.u32 %s272, 1
          %s1909 = scalar_lea.sflag [#allocation3], %s1908
          %s1910 = sand.u32 %s272, 1
          %s1911 = smul.addr %s1910, 32
          %s1912 = scalar_lea.vmem [#allocation2], %s1911
          %1914 = dma.done %s1909, 512
        $region68: #{tpu_custom_call.1} parent=63 // pred_fallthru
          _
      $region64: #{tpu_custom_call.1} parent=5 // pred_fallthru
        _
    $region6: #{tpu_custom_call.1} parent=1 // loop_footer
      %s22 = sadd.s32 1, %s18
    $region7: #{tpu_custom_call.1} parent=1 // loop_footer_branch
      %17 = sbr.rel target = $region3
    $region8: #{tpu_custom_call.1} parent=1 // loop_exit
      _
    %1915 = vsyncpa [#allocation3], 1
    %s1916 = scalar_lea.sflag [#allocation3], 1
    %1917 = vsyncpa %s1916, 1

</llo_original>
